<compile_context>
chip_gen: v6e
topology: v6e:2x2x1
jax: 0.10.0
libtpu: 0.0.40
codegen_flags: <defaults>
</compile_context>

<pallas_src>
from functools import partial

import numpy as np
import jax
import jax.numpy as jnp
from jax.experimental import pallas as pl
from jax.experimental.pallas import tpu as pltpu


# ----------------------------------------------------------------------------
# deterministic parameter construction (derived, not learned)
# ----------------------------------------------------------------------------
def define_psf(sptial_grid, temprol_grid, slope):
    """Light-cone PSF on the 2x padded grid, shape (2T, 2N, 2N)."""
    N, M = sptial_grid, temprol_grid
    x_2n = np.linspace(-1.0, 1.0, 2 * N, dtype=np.float64)
    y_2n = x_2n
    z_2m = np.linspace(0.0, 2.0, 2 * M, dtype=np.float64)
    gy, gx, gz = np.meshgrid(y_2n, x_2n, z_2m, indexing="ij")    # (2N,2N,2M)
    a = (4.0 * slope) ** 2 * (gx ** 2 + gy ** 2) - gz
    b = np.abs(a)
    c = np.min(b, axis=2, keepdims=True)
    d = (np.abs(b - c) < 1e-8).astype(np.float64)
    e = d / np.sqrt(np.sum(d))
    f = np.roll(e, shift=N, axis=0)
    f = np.roll(f, shift=N, axis=1)
    return np.transpose(f, (2, 0, 1)).astype(np.float32)          # (2M,2N,2N)


def resampling_operator(temprol_grid):
    """LCT resampling matrices mtx_MxM (t->z) and mtxi_MxM (z->t)."""
    M = temprol_grid
    assert 2 ** int(round(np.log2(M))) == M
    row = M * M
    x = np.arange(1, row + 1, dtype=np.float64)
    mtx = np.zeros((row, M), dtype=np.float64)
    colidx = (np.ceil(np.sqrt(x)) - 1).astype(np.int64)
    mtx[np.arange(row), colidx] = 1.0
    mtx = mtx / np.sqrt(x)[:, None]
    for _ in range(int(round(np.log2(M)))):
        mtx = 0.5 * (mtx[0::2, :] + mtx[1::2, :])
    return mtx.astype(np.float32), mtx.T.astype(np.float32)


def build_params(spatial=16, crop=16, bin_len=0.01, wall_size=2.0,
                 material="diffuse", method="lct"):
    c = 3e8
    width = wall_size / 2.0
    bin_resolution = bin_len / c
    trange = crop * c * bin_resolution

    gridz = np.arange(crop, dtype=np.float32) / (crop - 1)
    gridz_pow = gridz ** 4 if material == "diffuse" else gridz ** 2

    slope = width / trange
    psf = define_psf(spatial, crop, slope)
    fpsf = np.fft.fftn(psf)
    if method == "lct":
        snr = 1e-1
        invpsf = np.conjugate(fpsf) / (1.0 / snr +
                                       np.real(fpsf) ** 2 + np.imag(fpsf) ** 2)
    else:  # 'bp'
        invpsf = np.conjugate(fpsf)

    mtx, mtxi = resampling_operator(crop)

    # Fold radiometric attenuation into the forward resampling matrix:
    #   mtx @ diag(gridz**4) == mtx * gridz4[None, :]
    mtx_att = (mtx * gridz_pow[None, :]).astype(np.float32)       # (T, T) numpy

    # Half-spectrum (rFFT along W) of the Wiener inverse PSF.  invpsf is
    # Hermitian (FFT of a real PSF, real even denominator), so the half
    # spectrum + irfftn reproduce real(ifftn(full)).
    Nh = spatial + 1
    inv_h = invpsf[:, :, :Nh].astype(np.complex64)                # (2T, 2N, N+1)
    return {
        "spatial": spatial,
        "crop": crop,
        "mtx_att": mtx_att,                                       # numpy, sliced+cached per (tbes,tens)
        "mtxi": jnp.asarray(mtxi, dtype=jnp.bfloat16),            # bf16 MXU operand
        "invpsf_h": jnp.asarray(inv_h),                           # complex64, fused XLA multiply
    }


# ----------------------------------------------------------------------------
# Pallas kernels
# ----------------------------------------------------------------------------
def _resample_kernel(mtx_ref, x_ref, o_ref):
    # mtx_ref: (1, T, Tk)       bf16  per-batch attenuated + time-shifted matrix
    # x_ref:   (1, 1, Tk, sblk) bf16  raw transients, lanes = spatial chunk
    # o_ref:   (1, 1, T, sblk)  f32   one wide MXU contraction per grid step
    o_ref[0, 0] = jnp.dot(mtx_ref[0], x_ref[0, 0],
                          preferred_element_type=jnp.float32)


def _inv_resample_relu_kernel(mtxi_ref, x_ref, o_ref):
    # mtxi_ref: (T, T) bf16 ; x_ref: (1, T, sblk) bf16 ; o_ref: (1, T, sblk) f32
    y = jnp.dot(mtxi_ref[...], x_ref[0], preferred_element_type=jnp.float32)
    o_ref[0] = jnp.maximum(y, 0.0)


def _pick_lane_tile(s, rows, bytes_per_el=4, cap_bytes=2 << 20):
    """Lane-tile width for the flattened spatial axis.

    Keeps blocks lane-dense (multiples of 128), bounds the per-step block to
    ~cap_bytes (comfortable under v7x's 32 MiB scoped-VMEM default with
    double-buffering), and prefers >=2 tiles so every generation gets a deep
    enough grid for DMA/compute overlap (v7x: >=3-4 steps per TensorCore).
    """
    if s < 256 or s % 128 != 0:
        return s, 1
    max_lanes = max(128, ((cap_bytes // (rows * bytes_per_el)) // 128) * 128)
    target = min(s // 2, max_lanes)
    blk = 128
    for cand in range(128, target + 1, 128):
        if s % cand == 0:
            blk = cand
    return blk, s // blk


def _attenuate_resample(mtx_b, data):
    # Steps 2+3: (T,Tk)@(Tk,sblk) per grid step, grid over (B, D, lane tiles).
    # No Python unroll, no in-kernel zero-pad (the 2T pad is folded into the
    # single jnp.pad downstream).
    B, D, Tk, S = data.shape
    T = mtx_b.shape[1]
    sblk, ns = _pick_lane_tile(S, T)
    return pl.pallas_call(
        _resample_kernel,
        out_shape=jax.ShapeDtypeStruct((B, D, T, S), jnp.float32),
        grid_spec=pltpu.PrefetchScalarGridSpec(
            num_scalar_prefetch=0,
            grid=(B, D, ns),
            in_specs=[
                pl.BlockSpec((1, T, Tk), lambda b, d, s: (b, 0, 0)),
                pl.BlockSpec((1, 1, Tk, sblk), lambda b, d, s: (b, d, 0, s)),
            ],
            out_specs=pl.BlockSpec((1, 1, T, sblk), lambda b, d, s: (b, d, 0, s)),
        ),
        compiler_params=pltpu.CompilerParams(
            dimension_semantics=("parallel", "parallel", "parallel")),
    )(mtx_b, data)


def _inv_resample_relu(mtxi, vol):
    # Step 5: (T,T)@(T,sblk) per grid step + ReLU, grid over (B*D, lane tiles).
    BD, T, S = vol.shape
    sblk, ns = _pick_lane_tile(S, T)
    return pl.pallas_call(
        _inv_resample_relu_kernel,
        out_shape=jax.ShapeDtypeStruct((BD, T, S), jnp.float32),
        grid_spec=pltpu.PrefetchScalarGridSpec(
            num_scalar_prefetch=0,
            grid=(BD, ns),
            in_specs=[
                pl.BlockSpec((T, T), lambda b, s: (0, 0)),
                pl.BlockSpec((1, T, sblk), lambda b, s: (b, 0, s)),
            ],
            out_specs=pl.BlockSpec((1, T, sblk), lambda b, s: (b, 0, s)),
        ),
        compiler_params=pltpu.CompilerParams(
            dimension_semantics=("parallel", "parallel")),
    )(mtxi, vol)


# ----------------------------------------------------------------------------
# forward (mirrors diffmodule.forward with views=None)
# ----------------------------------------------------------------------------
@partial(jax.jit, static_argnames=("T", "H", "W"))
def _lct_pipeline(mtx_b, mtxi, invpsf_h, data, *, T, H, W):
    B, D, _, S = data.shape
    BD = B * D

    # 2+3) attenuated, time-shifted resampling matmul (Pallas / MXU, bf16 in,
    #      f32 out); emits the UNPADDED (B,D,T,S) volume.
    vol_t = _attenuate_resample(mtx_b, data)                       # (B,D,T,S)

    # 4) single zero-pad to (2T,2H,2W) (T, H and W pads in one jnp.pad so the
    #    8x slab is written exactly once), 3-D rFFT, Wiener filter, irFFT.
    # TODO(synk): 3-D FFT / iFFT have no Pallas primitive on TPU; kept in jnp.
    datapad = jnp.pad(vol_t.reshape(BD, T, H, W),
                      ((0, 0), (0, T), (0, H), (0, W)))
    datafre = jnp.fft.rfftn(datapad, axes=(-3, -2, -1))            # (BD,2T,2H,W+1)
    # Frequency-domain Wiener multiply: left to XLA so it fuses as a single
    # complex elementwise op on the spectrum (no real/imag de-/re-interleave
    # round trips through HBM around a custom call).
    refre = datafre * invpsf_h[None]
    re = jnp.fft.irfftn(refre, s=(2 * T, 2 * H, 2 * W), axes=(-3, -2, -1))
    # TODO(synk): at spatial>=32 this crop could be folded into the inverse
    # kernel's BlockSpec (T/H crops are free rectangular block crops) to save
    # one HBM round trip; at spatial=16 the strided DMA eats the saving.
    vol = re[:, :T, :H, :W].reshape(BD, T, S).astype(jnp.bfloat16)

    # 5) inverse resampling matmul + ReLU  (Pallas / MXU)
    out = _inv_resample_relu(mtxi, vol)
    return out.reshape(B, D, T, H, W)


def _get_mtx_b(params, tbes, tens, B, Tn):
    """Per-batch attenuated + time-shifted resampling matrices (bf16, cached).

    tbes/tens are consumed as STATIC python ints (matches the module's use);
    the per-batch zero-pad/time-shift is realized by column-slicing the
    attenuation-folded matrix (mtx_att[:, tb:te] @ x_raw), so the zero time
    bins never reach HBM or the MXU.  The device array is cached per
    (B, Tn, tbes, tens) so host numpy work + H2D upload leave the steady-state
    critical path.
    """
    T = params["crop"]
    Tk = min(T, ((Tn + 7) // 8) * 8)                 # sublane-align the K dim
    key = (B, Tn, tuple(int(t) for t in tbes), tuple(int(t) for t in tens))
    cache = params.setdefault("_mtx_b_cache", {})
    mtx_b = cache.get(key)
    if mtx_b is None:
        mtx_att = params["mtx_att"]                  # numpy (T, T)
        mats = np.zeros((B, T, Tk), np.float32)
        for i in range(B):
            tb, te = int(tbes[i]), int(tens[i])
            assert te - tb == Tn and 0 <= tb and te <= T
            mats[i, :, :Tn] = mtx_att[:, tb:te]      # time pad == column select
        mtx_b = jnp.asarray(mats, dtype=jnp.bfloat16)
        cache[key] = mtx_b
    return mtx_b, Tk


def diffmodule_forward(params, feature_bdthw, tbes, tens, views=None):
    # TODO(synk): mview / views!=None branch (F.affine_grid + F.grid_sample
    # trilinear resampling onto rotated view grids) is not implemented here.
    assert views is None
    B, D, Tn, H, W = feature_bdthw.shape
    T = params["crop"]
    assert H == W == params["spatial"]

    mtx_b, Tk = _get_mtx_b(params, tbes, tens, B, Tn)

    data = jnp.asarray(feature_bdthw, dtype=jnp.bfloat16).reshape(B, D, Tn, H * W)
    if Tk != Tn:
        data = jnp.pad(data, ((0, 0), (0, 0), (0, Tk - Tn), (0, 0)))

    return _lct_pipeline(mtx_b, params["mtxi"], params["invpsf_h"], data,
                         T=T, H=H, W=W)


# ----------------------------------------------------------------------------
# pure-numpy reference of the original (unfused, full-FFT) formulation
# ----------------------------------------------------------------------------
def _reference_forward_np(feature, tbes, tens, spatial, crop,
                          bin_len=0.01, wall_size=2.0,
                          material="diffuse", method="lct"):
    feature = np.asarray(feature, np.float64)
    B, D, Tn, H, W = feature.shape
    T = crop
    width = wall_size / 2.0
    trange = T * bin_len
    gridz = np.arange(T, dtype=np.float64) / (T - 1)
    gpow = gridz ** 4 if material == "diffuse" else gridz ** 2
    psf = define_psf(spatial, T, width / trange)
    fpsf = np.fft.fftn(psf)
    if method == "lct":
        invpsf = np.conjugate(fpsf) / (10.0 + np.real(fpsf) ** 2 + np.imag(fpsf) ** 2)
    else:
        invpsf = np.conjugate(fpsf)
    mtx, mtxi = resampling_operator(T)

    x = np.zeros((B, D, T, H, W), np.float64)
    for i in range(B):
        x[i, :, int(tbes[i]):int(tens[i])] = feature[i]
    x = x * gpow.reshape(1, 1, T, 1, 1)
    x = np.einsum("ij,bdjs->bdis", mtx.astype(np.float64),
                  x.reshape(B, D, T, H * W)).reshape(B * D, T, H, W)
    pad = np.zeros((B * D, 2 * T, 2 * H, 2 * W), np.float64)
    pad[:, :T, :H, :W] = x
    fre = np.fft.fftn(pad, axes=(-3, -2, -1)) * invpsf[None]
    re = np.real(np.fft.ifftn(fre, axes=(-3, -2, -1)))[:, :T, :H, :W]
    out = np.einsum("ij,bjs->bis", mtxi.astype(np.float64),
                    re.reshape(B * D, T, H * W))
    return np.maximum(out, 0.0).reshape(B, D, T, H, W).astype(np.float32)


if __name__ == "__main__":
    B, D, Tn, H, W = 2, 2, 12, 16, 16
    crop = 16                                        # padded time bins (power of 2)
    params = build_params(spatial=H, crop=crop, bin_len=0.01, wall_size=2.0,
                          material="diffuse", method="lct")

    key = jax.random.PRNGKey(0)
    feature = jax.random.uniform(key, (B, D, Tn, H, W), dtype=jnp.float32)
    tbes = [0, 2]                                    # per-batch time offsets
    tens = [12, 14]                                  # tbes[i] + Tn

    out = diffmodule_forward(params, feature, tbes, tens)
    out = jax.block_until_ready(out)
    assert out.shape == (B, D, crop, H, W)
    assert bool(jnp.all(jnp.isfinite(out)))

    ref = _reference_forward_np(np.asarray(feature), tbes, tens,
                                spatial=H, crop=crop)
    err = float(np.max(np.abs(np.asarray(out) - ref)))
    scale = float(np.max(np.abs(ref))) + 1e-12
    # bf16 matmul operands (per perf review) give ~0.5-1% relative error vs
    # the float64 reference; 3% of the output scale is a meaningful functional
    # check (semantic bugs produce O(100%) errors).
    assert err <= 3e-2 * scale + 1e-4, f"mismatch: err={err}, ref scale={scale}"
    print("KERNEL_OK")
</pallas_src>

<mosaic_0001>
module attributes {stable_mosaic.version = 11 : i64} {
  func.func @_resample_kernel(%arg0: i32, %arg1: i32, %arg2: i32, %arg3: memref<1x16x16xbf16, #tpu.memory_space<vmem>>, %arg4: memref<1x1x16x128xbf16, #tpu.memory_space<vmem>>, %arg5: memref<1x1x16x128xf32, #tpu.memory_space<vmem>>) attributes {dimension_semantics = [#tpu.dimension_semantics<parallel>, #tpu.dimension_semantics<parallel>, #tpu.dimension_semantics<parallel>], iteration_bounds = array<i64: 2, 2, 2>, scalar_prefetch = 0 : i64, scratch_operands = 0 : i64, tpu.core_type = #tpu.core_type<tc>, window_params = [{transform_indices = @transform_0, window_bounds = array<i64: 1, 16, 16>}, {transform_indices = @transform_1, window_bounds = array<i64: 1, 1, 16, 128>}, {transform_indices = @transform_2, window_bounds = array<i64: 1, 1, 16, 128>}]} {
    %c0 = arith.constant 0 : index
    %c0_0 = arith.constant 0 : index
    %c0_1 = arith.constant 0 : index
    %0 = vector.load %arg3[%c0, %c0_0, %c0_1] : memref<1x16x16xbf16, #tpu.memory_space<vmem>>, vector<1x16x16xbf16>
    %1 = vector.shape_cast %0 : vector<1x16x16xbf16> to vector<16x16xbf16>
    %c0_2 = arith.constant 0 : index
    %c0_3 = arith.constant 0 : index
    %c0_4 = arith.constant 0 : index
    %c0_5 = arith.constant 0 : index
    %2 = vector.load %arg4[%c0_2, %c0_3, %c0_4, %c0_5] : memref<1x1x16x128xbf16, #tpu.memory_space<vmem>>, vector<1x1x16x128xbf16>
    %3 = vector.shape_cast %2 : vector<1x1x16x128xbf16> to vector<16x128xbf16>
    %cst = arith.constant dense<0.000000e+00> : vector<16x128xf32>
    %4 = tpu.matmul %1, %3, %cst {dimension_numbers = #tpu.dot_dimension_numbers<[1], [0], [0], [1], [0, 0, 1, 1], [], []>} : vector<16x16xbf16>, vector<16x128xbf16>, vector<16x128xf32> -> vector<16x128xf32>
    %c0_6 = arith.constant 0 : index
    %c0_7 = arith.constant 0 : index
    %c0_8 = arith.constant 0 : index
    %c0_9 = arith.constant 0 : index
    %5 = vector.load %arg5[%c0_6, %c0_7, %c0_8, %c0_9] : memref<1x1x16x128xf32, #tpu.memory_space<vmem>>, vector<1x1x16x128xf32>
    %6 = vector.shape_cast %5 : vector<1x1x16x128xf32> to vector<16x128xf32>
    %7 = vector.shape_cast %4 : vector<16x128xf32> to vector<1x1x16x128xf32>
    tpu.vector_store %arg5[%c0_6, %c0_7, %c0_8, %c0_9], %7 {strides = array<i32>} : memref<1x1x16x128xf32, #tpu.memory_space<vmem>>, vector<1x1x16x128xf32>,
    return
  }
  func.func @transform_0(%arg0: i32, %arg1: i32, %arg2: i32) -> (i32, i32, i32) {
    %c0_i32 = arith.constant 0 : i32
    %c0_i32_0 = arith.constant 0 : i32
    %c0_i32_1 = arith.constant 0 : i32
    return %arg0, %c0_i32, %c0_i32_0 : i32, i32, i32
  }
  func.func @transform_1(%arg0: i32, %arg1: i32, %arg2: i32) -> (i32, i32, i32, i32) {
    %c0_i32 = arith.constant 0 : i32
    %c0_i32_0 = arith.constant 0 : i32
    return %arg0, %arg1, %c0_i32, %arg2 : i32, i32, i32, i32
  }
  func.func @transform_2(%arg0: i32, %arg1: i32, %arg2: i32) -> (i32, i32, i32, i32) {
    %c0_i32 = arith.constant 0 : i32
    %c0_i32_0 = arith.constant 0 : i32
    return %arg0, %arg1, %c0_i32, %arg2 : i32, i32, i32, i32
  }
}

module attributes {stable_mosaic.version = 11 : i64} {
  func.func @_inv_resample_relu_kernel(%arg0: i32, %arg1: i32, %arg2: memref<16x16xbf16, #tpu.memory_space<vmem>>, %arg3: memref<1x16x128xbf16, #tpu.memory_space<vmem>>, %arg4: memref<1x16x128xf32, #tpu.memory_space<vmem>>) attributes {dimension_semantics = [#tpu.dimension_semantics<parallel>, #tpu.dimension_semantics<parallel>], iteration_bounds = array<i64: 4, 2>, scalar_prefetch = 0 : i64, scratch_operands = 0 : i64, tpu.core_type = #tpu.core_type<tc>, window_params = [{pipeline_mode = #tpu.pipeline_mode<synchronous>, transform_indices = @transform_0, window_bounds = array<i64: 16, 16>}, {transform_indices = @transform_1, window_bounds = array<i64: 1, 16, 128>}, {transform_indices = @transform_2, window_bounds = array<i64: 1, 16, 128>}]} {
    %c0 = arith.constant 0 : index
    %c0_0 = arith.constant 0 : index
    %0 = vector.load %arg2[%c0, %c0_0] : memref<16x16xbf16, #tpu.memory_space<vmem>>, vector<16x16xbf16>
    %c0_1 = arith.constant 0 : index
    %c0_2 = arith.constant 0 : index
    %c0_3 = arith.constant 0 : index
    %1 = vector.load %arg3[%c0_1, %c0_2, %c0_3] : memref<1x16x128xbf16, #tpu.memory_space<vmem>>, vector<1x16x128xbf16>
    %2 = vector.shape_cast %1 : vector<1x16x128xbf16> to vector<16x128xbf16>
    %cst = arith.constant dense<0.000000e+00> : vector<16x128xf32>
    %3 = tpu.matmul %0, %2, %cst {dimension_numbers = #tpu.dot_dimension_numbers<[1], [0], [0], [1], [0, 0, 1, 1], [], []>} : vector<16x16xbf16>, vector<16x128xbf16>, vector<16x128xf32> -> vector<16x128xf32>
    %cst_4 = arith.constant 0.000000e+00 : f32
    %4 = vector.broadcast %cst_4 : f32 to vector<16x128xf32>
    %5 = arith.maximumf %3, %4 : vector<16x128xf32>
    %c0_5 = arith.constant 0 : index
    %c0_6 = arith.constant 0 : index
    %c0_7 = arith.constant 0 : index
    %6 = vector.load %arg4[%c0_5, %c0_6, %c0_7] : memref<1x16x128xf32, #tpu.memory_space<vmem>>, vector<1x16x128xf32>
    %7 = vector.shape_cast %6 : vector<1x16x128xf32> to vector<16x128xf32>
    %8 = vector.shape_cast %5 : vector<16x128xf32> to vector<1x16x128xf32>
    tpu.vector_store %arg4[%c0_5, %c0_6, %c0_7], %8 {strides = array<i32>} : memref<1x16x128xf32, #tpu.memory_space<vmem>>, vector<1x16x128xf32>,
    return
  }
  func.func @transform_0(%arg0: i32, %arg1: i32) -> (i32, i32) {
    %c0_i32 = arith.constant 0 : i32
    %c0_i32_0 = arith.constant 0 : i32
    %c0_i32_1 = arith.constant 0 : i32
    return %c0_i32, %c0_i32_0 : i32, i32
  }
  func.func @transform_1(%arg0: i32, %arg1: i32) -> (i32, i32, i32) {
    %c0_i32 = arith.constant 0 : i32
    %c0_i32_0 = arith.constant 0 : i32
    return %arg0, %c0_i32, %arg1 : i32, i32, i32
  }
  func.func @transform_2(%arg0: i32, %arg1: i32) -> (i32, i32, i32) {
    %c0_i32 = arith.constant 0 : i32
    %c0_i32_0 = arith.constant 0 : i32
    return %arg0, %c0_i32, %arg1 : i32, i32, i32
  }
}

</mosaic_0001>

<llo_original>
// kernel: _lct_pipeline.2
$region0: #{_lct_pipeline.2}
  #allocation0 [shape = 'u32[]', space=smem, size = 0x4, offset = 0x4, fixed_abs, tag = 'smem constant byte address 0x4 - core index']
  #allocation1 [shape = 'u32[144,128]{1,0:T(1,128)}', space=vmem, size = 0x12000, scoped, tag = 'internal scratch']
  %s0 = inlined_call_operand.hbm [shape: bf16[2,16,16], index: 0, kind: input, shape index: {}]
  %s1 = inlined_call_operand.hbm [shape: bf16[2,2,16,256], index: 1, kind: input, shape index: {}]
  %s2 = inlined_call_operand.vmem [shape: f32[2,2,16,256], index: 2, kind: output, shape index: {}]
  %s3 = sld [smem:[#allocation0]]
  $region83: #{_lct_pipeline.2} parent=0
    _
  %s5 = ssub.s32 1, %s3
  %s6 = scalar_select 0, %s5, %s3
  $region1: #{_lct_pipeline.2} parent=0
    #allocation2 [shape = 'u8[8192]{0}', space=vmem, size = 0x2000, scoped, tag = 'input window, operand 0']
    #allocation3 [shape = 's32[2]{0}', space=sflag, size = 0x8, scoped, tag = 'scoped memory for _lct_pipeline.2']
    #allocation4 [shape = 'u8[8192]{0}', space=vmem, size = 0x2000, scoped, tag = 'input window, operand 1']
    #allocation5 [shape = 's32[2]{0}', space=sflag, size = 0x8, scoped, tag = 'scoped memory for _lct_pipeline.2']
    #allocation6 [shape = 'u8[16384]{0}', space=vmem, size = 0x4000, scoped, tag = 'output window, operand 0']
    %7 = vsyncpa [#allocation3], 0
    %s8 = scalar_lea.sflag [#allocation3], 1
    %9 = vsyncpa %s8, 0
    %10 = vsyncpa [#allocation5], 0
    %s11 = scalar_lea.sflag [#allocation5], 1
    %12 = vsyncpa %s11, 0
    loop: start=0, step=1, limit=10
    $region2: #{_lct_pipeline.2} parent=1 // loop_pre_header
      _
    $region3: #{_lct_pipeline.2} parent=1 // loop_header
      %s14 = sphi 0, %s18
      %p15 = scmp.ge.s32.totalorder %s14, 10
      %s21 = sphi 0, %s40
      %s22 = sphi 0, %s36
      %s23 = sphi 0, %s32
      %s24 = sphi 0, %s21
      %s25 = sphi 0, %s22
      %s26 = sphi 0, %s23
      %s27 = sphi 0, %s24
      %s28 = sphi 0, %s25
      %s29 = sphi 0, %s26
      %s43 = sphi 0, %s45
      %s46 = sphi 0, %s43
      %s47 = sphi 0, %s46
      %s63 = sphi 0, %s47
      %s73 = sphi 0, %s75
      %s76 = sphi 0, %s73
      %s77 = sphi 0, %s76
      %s93 = sphi 0, %s77
      %s103 = sphi 0, %s105
      %s106 = sphi 0, %s103
      %s107 = sphi 0, %s106
      %s123 = sphi 0, %s107
    $region4: #{_lct_pipeline.2} parent=1 // loop_header_branch
      %17 = sbr.rel (%p15) target = $region8
    $region5: #{_lct_pipeline.2} parent=1 // loop_body
      %s19 = ssub.s32 %s14, 1
      %s20 = ssub.s32 %s14, 2
      %s30 = sadd.s32 1, %s23
      %p31 = scmp.ge.s32.totalorder %s30, 2
      %s32 = scalar_select %p31, 0, %s30
      %s33 = sadd.s32 1, %s22
      %s34 = scalar_select %p31, %s33, %s22
      %p35 = scmp.ge.s32.totalorder %s34, 2
      %s36 = scalar_select %p35, 0, %s34
      %s37 = sadd.s32 1, %s21
      %s38 = scalar_select %p35, %s37, %s21
      %p39 = scmp.ge.s32.totalorder %s38, 2
      %s40 = scalar_select %p39, 0, %s38
      %s41 = ssub.s32 %s21, %s40
      %p42 = scmp.eq.s32.totalorder %s41, 0
      %s44 = sadd.s32 %s43, 1
      %s45 = scalar_select %p42, %s43, %s44
      %p48 = pneg %p42
      %p49 = scmp.eq.s32.totalorder %s14, 7
      %p50 = por %p48, %p49
      %p51 = scmp.ne.s32.totalorder %s43, %s46
      %p52 = scmp.eq.s32.totalorder %s14, 0
      %p53 = por %p51, %p52
      %p54 = scmp.ne.s32.totalorder %s43, %s46
      %p55 = scmp.eq.s32.totalorder %s19, 7
      %p56 = por %p54, %p55
      %p57 = scmp.ne.s32.totalorder %s46, %s47
      %p58 = scmp.eq.s32.totalorder %s19, 0
      %p59 = por %p57, %p58
      %p60 = scmp.ne.s32.totalorder %s46, %s47
      %p61 = scmp.eq.s32.totalorder %s20, 7
      %p62 = por %p60, %p61
      %p64 = scmp.ne.s32.totalorder %s47, %s63
      %p65 = scmp.eq.s32.totalorder %s20, 0
      %p66 = por %p64, %p65
      %s67 = ssub.s32 %s21, %s40
      %s68 = ssub.s32 %s22, %s36
      %s69 = sor.u32 %s67, %s68
      %s70 = ssub.s32 %s23, %s32
      %s71 = sor.u32 %s69, %s70
      %p72 = scmp.eq.s32.totalorder %s71, 0
      %s74 = sadd.s32 %s73, 1
      %s75 = scalar_select %p72, %s73, %s74
      %p78 = pneg %p72
      %p79 = scmp.eq.s32.totalorder %s14, 7
      %p80 = por %p78, %p79
      %p81 = scmp.ne.s32.totalorder %s73, %s76
      %p82 = scmp.eq.s32.totalorder %s14, 0
      %p83 = por %p81, %p82
      %p84 = scmp.ne.s32.totalorder %s73, %s76
      %p85 = scmp.eq.s32.totalorder %s19, 7
      %p86 = por %p84, %p85
      %p87 = scmp.ne.s32.totalorder %s76, %s77
      %p88 = scmp.eq.s32.totalorder %s19, 0
      %p89 = por %p87, %p88
      %p90 = scmp.ne.s32.totalorder %s76, %s77
      %p91 = scmp.eq.s32.totalorder %s20, 7
      %p92 = por %p90, %p91
      %p94 = scmp.ne.s32.totalorder %s77, %s93
      %p95 = scmp.eq.s32.totalorder %s20, 0
      %p96 = por %p94, %p95
      %s97 = ssub.s32 %s21, %s40
      %s98 = ssub.s32 %s22, %s36
      %s99 = sor.u32 %s97, %s98
      %s100 = ssub.s32 %s23, %s32
      %s101 = sor.u32 %s99, %s100
      %p102 = scmp.eq.s32.totalorder %s101, 0
      %s104 = sadd.s32 %s103, 1
      %s105 = scalar_select %p102, %s103, %s104
      %p108 = pneg %p102
      %p109 = scmp.eq.s32.totalorder %s14, 7
      %p110 = por %p108, %p109
      %p111 = scmp.ne.s32.totalorder %s103, %s106
      %p112 = scmp.eq.s32.totalorder %s14, 0
      %p113 = por %p111, %p112
      %p114 = scmp.ne.s32.totalorder %s103, %s106
      %p115 = scmp.eq.s32.totalorder %s19, 7
      %p116 = por %p114, %p115
      %p117 = scmp.ne.s32.totalorder %s106, %s107
      %p118 = scmp.eq.s32.totalorder %s19, 0
      %p119 = por %p117, %p118
      %p120 = scmp.ne.s32.totalorder %s106, %s107
      %p121 = scmp.eq.s32.totalorder %s20, 7
      %p122 = por %p120, %p121
      %p124 = scmp.ne.s32.totalorder %s107, %s123
      %p125 = scmp.eq.s32.totalorder %s20, 0
      %p126 = por %p124, %p125
      %p127 = scmp.le.s32.totalorder 1, %s14
      %p128 = scmp.lt.s32.totalorder %s14, 9
      %p129 = pnand %p127, %p128
      %p130 = pneg %p129
      // Predicated region
      $region9: #{_lct_pipeline.2} parent=5 // pred_check
        _
      $region10: #{_lct_pipeline.2} parent=5 // pred_check_branch
        %132 = sbr.rel (%p129) target = $region12
      $region11: #{_lct_pipeline.2} parent=5 // pred_region
        %s133 = ssub.s32 %s14, 1
      $region12: #{_lct_pipeline.2} parent=5 // pred_fallthru
        _
      %p134 = scmp.lt.s32.totalorder %s14, 8
      // Predicated region
      $region13: #{_lct_pipeline.2} parent=5 // pred_check
        %p135 = pneg %p134
      $region14: #{_lct_pipeline.2} parent=5 // pred_check_branch
        %137 = sbr.rel (%p135) target = $region16
      $region15: #{_lct_pipeline.2} parent=5 // pred_region
        // Predicated region
        $region17: #{_lct_pipeline.2} parent=15 // pred_check
          %p138 = pneg %p53
        $region18: #{_lct_pipeline.2} parent=15 // pred_check_branch
          %140 = sbr.rel (%p138) target = $region20
        $region19: #{_lct_pipeline.2} parent=15 // pred_region
          %s141 = sand.u32 %s43, 1
          %s142 = scalar_lea.sflag [#allocation3], %s141
          %s143 = sand.u32 %s43, 1
          %s144 = smul.addr %s143, 8
          %s145 = scalar_lea.vmem [#allocation2], %s144
          %s147 = ssub.s32 128, 128
          %148 = vsyncadd %s142, %s147
          %s149 = smul.addr %s21, 2
          %s150 = smul.addr %s149, 64
          %s151 = scalar_lea.hbm %s0, %s150
          %s152 = sshll.u32 %s145, 4
          %s153 = int_to_ptr.vmem [resolvable:$true] %s152
          %158 = dma.hbm_to_vmem [thread:$0]  %s151, 128, %s153, %s142, 64, 64, 4
        $region20: #{_lct_pipeline.2} parent=15 // pred_fallthru
          _
        // Predicated region
        $region21: #{_lct_pipeline.2} parent=15 // pred_check
          %p159 = pneg %p83
        $region22: #{_lct_pipeline.2} parent=15 // pred_check_branch
          %161 = sbr.rel (%p159) target = $region24
        $region23: #{_lct_pipeline.2} parent=15 // pred_region
          %s162 = sand.u32 %s73, 1
          %s163 = scalar_lea.sflag [#allocation5], %s162
          %s164 = sand.u32 %s73, 1
          %s165 = smul.addr %s164, 8
          %s166 = scalar_lea.vmem [#allocation4], %s165
          %s168 = ssub.s32 128, 128
          %169 = vsyncadd %s163, %s168
          %s170 = smul.addr %s22, 4
          %s171 = sadd.s32 %s23, %s170
          %s172 = smul.addr %s21, 8
          %s173 = sadd.s32 %s171, %s172
          %s174 = smul.addr %s173, 64
          %s175 = scalar_lea.hbm %s1, %s174
          %s176 = sshll.u32 %s166, 4
          %s177 = int_to_ptr.vmem [resolvable:$true] %s176
          %182 = dma.hbm_to_vmem [thread:$0]  %s175, 128, %s177, %s163, 128, 64, 4
        $region24: #{_lct_pipeline.2} parent=15 // pred_fallthru
          _
      $region16: #{_lct_pipeline.2} parent=5 // pred_fallthru
        _
      %p183 = scmp.le.s32.totalorder 1, %s14
      %p184 = scmp.lt.s32.totalorder %s14, 9
      %p185 = pnand %p183, %p184
      %p186 = pneg %p185
      // Predicated region
      $region25: #{_lct_pipeline.2} parent=5 // pred_check
        _
      $region26: #{_lct_pipeline.2} parent=5 // pred_check_branch
        %188 = sbr.rel (%p185) target = $region28
      $region27: #{_lct_pipeline.2} parent=5 // pred_region
        %s189 = ssub.s32 %s14, 1
        %s190 = sand.u32 %s46, 1
        %s191 = scalar_lea.sflag [#allocation3], %s190
        %s192 = sand.u32 %s46, 1
        %s193 = smul.addr %s192, 8
        %s194 = scalar_lea.vmem [#allocation2], %s193
        // Predicated region
        $region29: #{_lct_pipeline.2} parent=27 // pred_check
          %p195 = pneg %p59
        $region30: #{_lct_pipeline.2} parent=27 // pred_check_branch
          %197 = sbr.rel (%p195) target = $region32
        $region31: #{_lct_pipeline.2} parent=27 // pred_region
          %198 = dma.done %s191, 128
        $region32: #{_lct_pipeline.2} parent=27 // pred_fallthru
          _
        %s199 = sand.u32 %s76, 1
        %s200 = scalar_lea.sflag [#allocation5], %s199
        %s201 = sand.u32 %s76, 1
        %s202 = smul.addr %s201, 8
        %s203 = scalar_lea.vmem [#allocation4], %s202
        // Predicated region
        $region33: #{_lct_pipeline.2} parent=27 // pred_check
          %p204 = pneg %p89
        $region34: #{_lct_pipeline.2} parent=27 // pred_check_branch
          %206 = sbr.rel (%p204) target = $region36
        $region35: #{_lct_pipeline.2} parent=27 // pred_region
          %207 = dma.done %s200, 128
        $region36: #{_lct_pipeline.2} parent=27 // pred_fallthru
          _
        %s208 = sand.u32 %s46, 1
        %s209 = scalar_lea.sflag [#allocation3], %s208
        %s210 = sand.u32 %s46, 1
        %s211 = smul.addr %s210, 8
        %s212 = scalar_lea.vmem [#allocation2], %s211
        %p213 = pneg %p59
        %p214 = pneg %p56
        %s215 = sand.u32 %s76, 1
        %s216 = scalar_lea.sflag [#allocation5], %s215
        %s217 = sand.u32 %s76, 1
        %s218 = smul.addr %s217, 8
        %s219 = scalar_lea.vmem [#allocation4], %s218
        %p220 = pneg %p89
        %p221 = pneg %p86
        %p222 = pneg %p119
        %p223 = pneg %p116
        %s224 = sand.u32 %s106, 1
        %s225 = sand.u32 %s106, 1
        %s226 = smul.addr %s225, 16
        %s227 = scalar_lea.vmem [#allocation6], %s226
        %v229 = vld [vmem:[%s194] sm:$0xf]
        %v230 = vld [vmem:[%s194 + $0x4] sm:$0xf]
        %v231 = vld [vmem:[%s203] sm:$0xf]
        %v232 = vld [vmem:[%s203 + $0x4] sm:$0xf]
        %v235 = vunpack.c.l.b16 %v229
        %v236 = vunpack.c.l.b16 %v230
        %v237 = vpack.c.b16 %v236, %v235
        %v240 = vunpack.c.l.b16 %v231
        %v241 = vunpack.c.l.b16 %v232
        %v242 = vpack.c.b16 %v241, %v240
        %vm244 = vcmask 130048
        %v246 = vsel %vm244, %v237, 0
        %248 = vmatprep.subr.bf16.mxu0 0
        %249 = vmatpush1.bf16.msra.mxu0 0
        %250 = vmatprep.subr.bf16.mxu0 0
        %251 = vmatpush1.bf16.msra.mxu0 0
        %252 = vmatprep.subr.bf16.mxu0 0
        %253 = vmatpush1.bf16.msra.mxu0 0
        %254 = vmatprep.subr.bf16.mxu0 0
        %255 = vmatpush1.bf16.msra.mxu0 0
        %256 = vmatprep.subr.bf16.mxu0 0
        %257 = vmatpush1.bf16.msra.mxu0 0
        %258 = vmatprep.subr.bf16.mxu0 0
        %259 = vmatpush1.bf16.msra.mxu0 0
        %260 = vmatprep.subr.bf16.mxu0 0
        %261 = vmatpush1.bf16.msra.mxu0 0
        %262 = vmatprep.subr.bf16.mxu0 0
        %263 = vmatpush1.bf16.msra.mxu0 %v242
        %264 = vmatprep.subr.bf16.mxu0 0
        %265 = vmatpush2.bf16.msra.mxu0 0
        %266 = vmatprep.subr.bf16.mxu0 0
        %267 = vmatpush2.bf16.msra.mxu0 0
        %268 = vmatprep.subr.bf16.mxu0 0
        %269 = vmatpush2.bf16.msra.mxu0 0
        %270 = vmatprep.subr.bf16.mxu0 0
        %271 = vmatpush2.bf16.msra.mxu0 0
        %272 = vmatprep.subr.bf16.mxu0 0
        %273 = vmatpush2.bf16.msra.mxu0 0
        %274 = vmatprep.subr.bf16.mxu0 0
        %275 = vmatpush2.bf16.msra.mxu0 0
        %276 = vmatprep.subr.bf16.mxu0 0
        %277 = vmatpush2.bf16.msra.mxu0 0
        %278 = vmatprep.subr.bf16.mxu0 0
        %279 = vmatpush2.bf16.msra.mxu0 0
        %280 = vmatprep.mubr.bf16.mxu0 0
        %281 = vmatmul.mubr.bf16.gmra.mxu0 %v246
        %v282 = vpop.f32.mrf.mxu0
        %v283 = vadd.f32 0.0, %v282
        %v284 = vpop.f32.mrf.mxu0
        %v285 = vpop.f32.mrf.mxu0
        %v286 = vadd.f32 0.0, %v285
        %v287 = vpop.f32.mrf.mxu0
        %288 = vdwg.mxu0
        %289 = vst [vmem:[%s227] sm:$0xff] %v283
        %290 = vst [vmem:[%s227 + $0x8] sm:$0xff] %v286
        %s291 = sand.u32 %s106, 1
        %s292 = sand.u32 %s106, 1
        %s293 = smul.addr %s292, 16
        %s294 = scalar_lea.vmem [#allocation6], %s293
        // Predicated region
        $region37: #{_lct_pipeline.2} parent=27 // pred_check
          %p295 = pneg %p116
        $region38: #{_lct_pipeline.2} parent=27 // pred_check_branch
          %297 = sbr.rel (%p295) target = $region40
        $region39: #{_lct_pipeline.2} parent=27 // pred_region
          %s298 = smul.addr %s25, 4
          %s299 = sadd.s32 %s26, %s298
          %s300 = smul.addr %s24, 8
          %s301 = sadd.s32 %s299, %s300
          %s302 = smul.addr %s301, 8
          %s303 = scalar_lea.vmem %s2, %s302
          // Predicated region
          $region41: #{_lct_pipeline.2} parent=39 // pred_check
            _
          $region42: #{_lct_pipeline.2} parent=39 // pred_check_branch
            %305 = sbr.rel (0) target = $region44
          $region43: #{_lct_pipeline.2} parent=39 // pred_region
            // Predicated region
            $region45: #{_lct_pipeline.2} parent=43 // pred_check
              _
            $region46: #{_lct_pipeline.2} parent=43 // pred_check_branch
              %307 = sbr.rel (0) target = $region48
            $region47: #{_lct_pipeline.2} parent=43 // pred_region
              // Predicated region
              $region60: #{_lct_pipeline.2} parent=47 // pred_check
                _
              $region61: #{_lct_pipeline.2} parent=47 // pred_check_branch
                %325 = sbr.rel (0) target = $region63
              $region62: #{_lct_pipeline.2} parent=47 // pred_region
                loop: start=0, step=1, limit=1
                $region64: #{_lct_pipeline.2} parent=62 // loop_pre_header
                  _
                $region65: #{_lct_pipeline.2} parent=62 // loop_header
                  %s327 = sphi 0, %s331
                  %p328 = scmp.ge.s32.totalorder %s327, 1
                  %s332 = sphi %s294, %s294
                  %s333 = sphi %s303, %s303
                $region66: #{_lct_pipeline.2} parent=62 // loop_header_branch
                  %330 = sbr.rel (%p328) target = $region70
                $region67: #{_lct_pipeline.2} parent=62 // loop_body
                  %v334 = vld [vmem:[%s332] sm:$0xff]
                  %335 = vst [vmem:[%s333] sm:$0xff] %v334
                  %v336 = vld [vmem:[%s332 + $0x8] sm:$0xff]
                  %337 = vst [vmem:[%s333 + $0x10] sm:$0xff] %v336
                $region68: #{_lct_pipeline.2} parent=62 // loop_footer
                  %s331 = sadd.s32 1, %s327
                $region69: #{_lct_pipeline.2} parent=62 // loop_footer_branch
                  %326 = sbr.rel target = $region65
                $region70: #{_lct_pipeline.2} parent=62 // loop_exit
                  _
              $region63: #{_lct_pipeline.2} parent=47 // pred_fallthru
                _
              // Predicated region
              $region71: #{_lct_pipeline.2} parent=47 // pred_check
                _
              $region72: #{_lct_pipeline.2} parent=47 // pred_check_branch
                %339 = sbr.rel target = $region74
              $region73: #{_lct_pipeline.2} parent=47 // pred_region
                _
              $region74: #{_lct_pipeline.2} parent=47 // pred_fallthru
                _
            $region48: #{_lct_pipeline.2} parent=43 // pred_fallthru
              _
            // Predicated region
            $region49: #{_lct_pipeline.2} parent=43 // pred_check
              _
            $region50: #{_lct_pipeline.2} parent=43 // pred_check_branch
              %309 = sbr.rel target = $region52
            $region51: #{_lct_pipeline.2} parent=43 // pred_region
              %s311 = ssub.s32 256, 1
              loop: start=0, step=1, limit=1
              $region53: #{_lct_pipeline.2} parent=51 // loop_pre_header
                _
              $region54: #{_lct_pipeline.2} parent=51 // loop_header
                %s313 = sphi 0, %s317
                %p314 = scmp.ge.s32.totalorder %s313, 1
                %s318 = sphi %s294, %s294
                %s319 = sphi %s303, %s303
              $region55: #{_lct_pipeline.2} parent=51 // loop_header_branch
                %316 = sbr.rel (%p314) target = $region59
              $region56: #{_lct_pipeline.2} parent=51 // loop_body
                %v320 = vld [vmem:[%s318] sm:%s311]
                %321 = vst [vmem:[%s319] sm:%s311] %v320
                %v322 = vld [vmem:[%s318 + $0x8] sm:%s311]
                %323 = vst [vmem:[%s319 + $0x10] sm:%s311] %v322
              $region57: #{_lct_pipeline.2} parent=51 // loop_footer
                %s317 = sadd.s32 1, %s313
              $region58: #{_lct_pipeline.2} parent=51 // loop_footer_branch
                %312 = sbr.rel target = $region54
              $region59: #{_lct_pipeline.2} parent=51 // loop_exit
                _
            $region52: #{_lct_pipeline.2} parent=43 // pred_fallthru
              _
          $region44: #{_lct_pipeline.2} parent=39 // pred_fallthru
            _
          %340 = vnop
        $region40: #{_lct_pipeline.2} parent=27 // pred_fallthru
          _
      $region28: #{_lct_pipeline.2} parent=5 // pred_fallthru
        _
      %p341 = scmp.le.s32.totalorder 2, %s14
      // Predicated region
      $region75: #{_lct_pipeline.2} parent=5 // pred_check
        %p342 = pneg %p341
      $region76: #{_lct_pipeline.2} parent=5 // pred_check_branch
        %344 = sbr.rel (%p342) target = $region78
      $region77: #{_lct_pipeline.2} parent=5 // pred_region
        %s345 = ssub.s32 %s14, 2
        // Predicated region
        $region79: #{_lct_pipeline.2} parent=77 // pred_check
          %p346 = pneg %p122
        $region80: #{_lct_pipeline.2} parent=77 // pred_check_branch
          %348 = sbr.rel (%p346) target = $region82
        $region81: #{_lct_pipeline.2} parent=77 // pred_region
          %s349 = sand.u32 %s107, 1
          %s350 = sand.u32 %s107, 1
          %s351 = smul.addr %s350, 16
          %s352 = scalar_lea.vmem [#allocation6], %s351
        $region82: #{_lct_pipeline.2} parent=77 // pred_fallthru
          _
      $region78: #{_lct_pipeline.2} parent=5 // pred_fallthru
        _
    $region6: #{_lct_pipeline.2} parent=1 // loop_footer
      %s18 = sadd.s32 1, %s14
    $region7: #{_lct_pipeline.2} parent=1 // loop_footer_branch
      %13 = sbr.rel target = $region3
    $region8: #{_lct_pipeline.2} parent=1 // loop_exit
      _
    %353 = vsyncpa [#allocation3], 1
    %s354 = scalar_lea.sflag [#allocation3], 1
    %355 = vsyncpa %s354, 1
    %356 = vsyncpa [#allocation5], 1
    %s357 = scalar_lea.sflag [#allocation5], 1
    %358 = vsyncpa %s357, 1

// kernel: custom-call.1
$region0: #{custom-call.1}
  %s0 = inlined_call_operand.hbm [shape: c64[32,32,17], index: 0, kind: input, shape index: {}]
  %s1 = inlined_call_operand.vmem [shape: f32[32,32,17], index: 1, kind: output, shape index: {}]
  %s2 = scalar_lea.hbm %s0, 8704
  $region1: #{custom-call.1} parent=0
    #allocation0 [shape = 's32[1]{0}', space=sflag, size = 0x4, scoped, tag = 'scoped memory for custom-call.1']
    %3 = vsyncpa [#allocation0], 0
    %s4 = sshll.u32 %s1, 4
    %s5 = int_to_ptr.vmem [resolvable:$true] %s4
    %7 = dma.hbm_to_vmem [thread:$0]  %s2, 8704, %s5, [#allocation0]
    %8 = dma.done [#allocation0], 8704
    %9 = vsyncpa [#allocation0], 1

// kernel: custom-call
$region0: #{custom-call}
  %s0 = inlined_call_operand.hbm [shape: c64[32,32,17], index: 0, kind: input, shape index: {}]
  %s1 = inlined_call_operand.vmem [shape: f32[32,32,17], index: 1, kind: output, shape index: {}]
  $region1: #{custom-call} parent=0
    #allocation0 [shape = 's32[1]{0}', space=sflag, size = 0x4, scoped, tag = 'scoped memory for custom-call']
    %2 = vsyncpa [#allocation0], 0
    %s3 = sshll.u32 %s1, 4
    %s4 = int_to_ptr.vmem [resolvable:$true] %s3
    %6 = dma.hbm_to_vmem [thread:$0]  %s0, 8704, %s4, [#allocation0]
    %7 = dma.done [#allocation0], 8704
    %8 = vsyncpa [#allocation0], 1

// kernel: reverse.1
$region0: #{reverse.1}
  #allocation0 [shape = 's32[1]{0}', space=sflag, size = 0x4, scoped, tag = 'scoped memory for reverse.1']
  %s0 = inlined_call_operand.vmem [shape: f32[4,32,32,15], index: 0, kind: input, shape index: {}]
  %s1 = inlined_call_operand.vmem [shape: f32[4,32,32,15], index: 1, kind: output, shape index: {}]
  %s2 = scalar_lea.vmem %s0, 448
  %v3 = vld [vmem:[%s2] sm:$0xff]
  %4 = vst [vmem:[%s1] sm:$0xff] %v3
  %s5 = scalar_lea.vmem %s0, 928
  %v6 = vld [vmem:[%s5] sm:$0xff]
  %s7 = scalar_lea.vmem %s1, 480
  %8 = vst [vmem:[%s7] sm:$0xff] %v6
  %s9 = scalar_lea.vmem %s0, 1408
  %v10 = vld [vmem:[%s9] sm:$0xff]
  %s11 = scalar_lea.vmem %s1, 960
  %12 = vst [vmem:[%s11] sm:$0xff] %v10
  %s13 = scalar_lea.vmem %s0, 1888
  %v14 = vld [vmem:[%s13] sm:$0xff]
  %s15 = scalar_lea.vmem %s1, 1440
  %16 = vst [vmem:[%s15] sm:$0xff] %v14
  %s17 = scalar_lea.vmem %s0, 416
  %v18 = vld [vmem:[%s17] sm:$0xff]
  %s19 = scalar_lea.vmem %s1, 32
  %20 = vst [vmem:[%s19] sm:$0xff] %v18
  %s21 = scalar_lea.vmem %s0, 896
  %v22 = vld [vmem:[%s21] sm:$0xff]
  %s23 = scalar_lea.vmem %s1, 512
  %24 = vst [vmem:[%s23] sm:$0xff] %v22
  %s25 = scalar_lea.vmem %s0, 1376
  %v26 = vld [vmem:[%s25] sm:$0xff]
  %s27 = scalar_lea.vmem %s1, 992
  %28 = vst [vmem:[%s27] sm:$0xff] %v26
  %s29 = scalar_lea.vmem %s0, 1856
  %v30 = vld [vmem:[%s29] sm:$0xff]
  %s31 = scalar_lea.vmem %s1, 1472
  %32 = vst [vmem:[%s31] sm:$0xff] %v30
  %s33 = scalar_lea.vmem %s0, 384
  %v34 = vld [vmem:[%s33] sm:$0xff]
  %s35 = scalar_lea.vmem %s1, 64
  %36 = vst [vmem:[%s35] sm:$0xff] %v34
  %s37 = scalar_lea.vmem %s0, 864
  %v38 = vld [vmem:[%s37] sm:$0xff]
  %s39 = scalar_lea.vmem %s1, 544
  %40 = vst [vmem:[%s39] sm:$0xff] %v38
  %s41 = scalar_lea.vmem %s0, 1344
  %v42 = vld [vmem:[%s41] sm:$0xff]
  %s43 = scalar_lea.vmem %s1, 1024
  %44 = vst [vmem:[%s43] sm:$0xff] %v42
  %s45 = scalar_lea.vmem %s0, 1824
  %v46 = vld [vmem:[%s45] sm:$0xff]
  %s47 = scalar_lea.vmem %s1, 1504
  %48 = vst [vmem:[%s47] sm:$0xff] %v46
  %s49 = scalar_lea.vmem %s0, 352
  %v50 = vld [vmem:[%s49] sm:$0xff]
  %s51 = scalar_lea.vmem %s1, 96
  %52 = vst [vmem:[%s51] sm:$0xff] %v50
  %s53 = scalar_lea.vmem %s0, 832
  %v54 = vld [vmem:[%s53] sm:$0xff]
  %s55 = scalar_lea.vmem %s1, 576
  %56 = vst [vmem:[%s55] sm:$0xff] %v54
  %s57 = scalar_lea.vmem %s0, 1312
  %v58 = vld [vmem:[%s57] sm:$0xff]
  %s59 = scalar_lea.vmem %s1, 1056
  %60 = vst [vmem:[%s59] sm:$0xff] %v58
  %s61 = scalar_lea.vmem %s0, 1792
  %v62 = vld [vmem:[%s61] sm:$0xff]
  %s63 = scalar_lea.vmem %s1, 1536
  %64 = vst [vmem:[%s63] sm:$0xff] %v62
  %s65 = scalar_lea.vmem %s0, 320
  %v66 = vld [vmem:[%s65] sm:$0xff]
  %s67 = scalar_lea.vmem %s1, 128
  %68 = vst [vmem:[%s67] sm:$0xff] %v66
  %s69 = scalar_lea.vmem %s0, 800
  %v70 = vld [vmem:[%s69] sm:$0xff]
  %s71 = scalar_lea.vmem %s1, 608
  %72 = vst [vmem:[%s71] sm:$0xff] %v70
  %s73 = scalar_lea.vmem %s0, 1280
  %v74 = vld [vmem:[%s73] sm:$0xff]
  %s75 = scalar_lea.vmem %s1, 1088
  %76 = vst [vmem:[%s75] sm:$0xff] %v74
  %s77 = scalar_lea.vmem %s0, 1760
  %v78 = vld [vmem:[%s77] sm:$0xff]
  %s79 = scalar_lea.vmem %s1, 1568
  %80 = vst [vmem:[%s79] sm:$0xff] %v78
  %s81 = scalar_lea.vmem %s0, 288
  %v82 = vld [vmem:[%s81] sm:$0xff]
  %s83 = scalar_lea.vmem %s1, 160
  %84 = vst [vmem:[%s83] sm:$0xff] %v82
  %s85 = scalar_lea.vmem %s0, 768
  %v86 = vld [vmem:[%s85] sm:$0xff]
  %s87 = scalar_lea.vmem %s1, 640
  %88 = vst [vmem:[%s87] sm:$0xff] %v86
  %s89 = scalar_lea.vmem %s0, 1248
  %v90 = vld [vmem:[%s89] sm:$0xff]
  %s91 = scalar_lea.vmem %s1, 1120
  %92 = vst [vmem:[%s91] sm:$0xff] %v90
  %s93 = scalar_lea.vmem %s0, 1728
  %v94 = vld [vmem:[%s93] sm:$0xff]
  %s95 = scalar_lea.vmem %s1, 1600
  %96 = vst [vmem:[%s95] sm:$0xff] %v94
  %s97 = scalar_lea.vmem %s0, 256
  %v98 = vld [vmem:[%s97] sm:$0xff]
  %s99 = scalar_lea.vmem %s1, 192
  %100 = vst [vmem:[%s99] sm:$0xff] %v98
  %s101 = scalar_lea.vmem %s0, 736
  %v102 = vld [vmem:[%s101] sm:$0xff]
  %s103 = scalar_lea.vmem %s1, 672
  %104 = vst [vmem:[%s103] sm:$0xff] %v102
  %s105 = scalar_lea.vmem %s0, 1216
  %v106 = vld [vmem:[%s105] sm:$0xff]
  %s107 = scalar_lea.vmem %s1, 1152
  %108 = vst [vmem:[%s107] sm:$0xff] %v106
  %s109 = scalar_lea.vmem %s0, 1696
  %v110 = vld [vmem:[%s109] sm:$0xff]
  %s111 = scalar_lea.vmem %s1, 1632
  %112 = vst [vmem:[%s111] sm:$0xff] %v110
  %s113 = scalar_lea.vmem %s0, 224
  %v114 = vld [vmem:[%s113] sm:$0xff]
  %s115 = scalar_lea.vmem %s1, 224
  %116 = vst [vmem:[%s115] sm:$0xff] %v114
  %s117 = scalar_lea.vmem %s0, 704
  %v118 = vld [vmem:[%s117] sm:$0xff]
  %s119 = scalar_lea.vmem %s1, 704
  %120 = vst [vmem:[%s119] sm:$0xff] %v118
  %s121 = scalar_lea.vmem %s0, 1184
  %v122 = vld [vmem:[%s121] sm:$0xff]
  %s123 = scalar_lea.vmem %s1, 1184
  %124 = vst [vmem:[%s123] sm:$0xff] %v122
  %s125 = scalar_lea.vmem %s0, 1664
  %v126 = vld [vmem:[%s125] sm:$0xff]
  %s127 = scalar_lea.vmem %s1, 1664
  %128 = vst [vmem:[%s127] sm:$0xff] %v126
  %s129 = scalar_lea.vmem %s0, 192
  %v130 = vld [vmem:[%s129] sm:$0xff]
  %s131 = scalar_lea.vmem %s1, 256
  %132 = vst [vmem:[%s131] sm:$0xff] %v130
  %s133 = scalar_lea.vmem %s0, 672
  %v134 = vld [vmem:[%s133] sm:$0xff]
  %s135 = scalar_lea.vmem %s1, 736
  %136 = vst [vmem:[%s135] sm:$0xff] %v134
  %s137 = scalar_lea.vmem %s0, 1152
  %v138 = vld [vmem:[%s137] sm:$0xff]
  %s139 = scalar_lea.vmem %s1, 1216
  %140 = vst [vmem:[%s139] sm:$0xff] %v138
  %s141 = scalar_lea.vmem %s0, 1632
  %v142 = vld [vmem:[%s141] sm:$0xff]
  %s143 = scalar_lea.vmem %s1, 1696
  %144 = vst [vmem:[%s143] sm:$0xff] %v142
  %s145 = scalar_lea.vmem %s0, 160
  %v146 = vld [vmem:[%s145] sm:$0xff]
  %s147 = scalar_lea.vmem %s1, 288
  %148 = vst [vmem:[%s147] sm:$0xff] %v146
  %s149 = scalar_lea.vmem %s0, 640
  %v150 = vld [vmem:[%s149] sm:$0xff]
  %s151 = scalar_lea.vmem %s1, 768
  %152 = vst [vmem:[%s151] sm:$0xff] %v150
  %s153 = scalar_lea.vmem %s0, 1120
  %v154 = vld [vmem:[%s153] sm:$0xff]
  %s155 = scalar_lea.vmem %s1, 1248
  %156 = vst [vmem:[%s155] sm:$0xff] %v154
  %s157 = scalar_lea.vmem %s0, 1600
  %v158 = vld [vmem:[%s157] sm:$0xff]
  %s159 = scalar_lea.vmem %s1, 1728
  %160 = vst [vmem:[%s159] sm:$0xff] %v158
  %s161 = scalar_lea.vmem %s0, 128
  %v162 = vld [vmem:[%s161] sm:$0xff]
  %s163 = scalar_lea.vmem %s1, 320
  %164 = vst [vmem:[%s163] sm:$0xff] %v162
  %s165 = scalar_lea.vmem %s0, 608
  %v166 = vld [vmem:[%s165] sm:$0xff]
  %s167 = scalar_lea.vmem %s1, 800
  %168 = vst [vmem:[%s167] sm:$0xff] %v166
  %s169 = scalar_lea.vmem %s0, 1088
  %v170 = vld [vmem:[%s169] sm:$0xff]
  %s171 = scalar_lea.vmem %s1, 1280
  %172 = vst [vmem:[%s171] sm:$0xff] %v170
  %s173 = scalar_lea.vmem %s0, 1568
  %v174 = vld [vmem:[%s173] sm:$0xff]
  %s175 = scalar_lea.vmem %s1, 1760
  %176 = vst [vmem:[%s175] sm:$0xff] %v174
  %s177 = scalar_lea.vmem %s0, 96
  %v178 = vld [vmem:[%s177] sm:$0xff]
  %s179 = scalar_lea.vmem %s1, 352
  %180 = vst [vmem:[%s179] sm:$0xff] %v178
  %s181 = scalar_lea.vmem %s0, 576
  %v182 = vld [vmem:[%s181] sm:$0xff]
  %s183 = scalar_lea.vmem %s1, 832
  %184 = vst [vmem:[%s183] sm:$0xff] %v182
  %s185 = scalar_lea.vmem %s0, 1056
  %v186 = vld [vmem:[%s185] sm:$0xff]
  %s187 = scalar_lea.vmem %s1, 1312
  %188 = vst [vmem:[%s187] sm:$0xff] %v186
  %s189 = scalar_lea.vmem %s0, 1536
  %v190 = vld [vmem:[%s189] sm:$0xff]
  %s191 = scalar_lea.vmem %s1, 1792
  %192 = vst [vmem:[%s191] sm:$0xff] %v190
  %s193 = scalar_lea.vmem %s0, 64
  %v194 = vld [vmem:[%s193] sm:$0xff]
  %s195 = scalar_lea.vmem %s1, 384
  %196 = vst [vmem:[%s195] sm:$0xff] %v194
  %s197 = scalar_lea.vmem %s0, 544
  %v198 = vld [vmem:[%s197] sm:$0xff]
  %s199 = scalar_lea.vmem %s1, 864
  %200 = vst [vmem:[%s199] sm:$0xff] %v198
  %s201 = scalar_lea.vmem %s0, 1024
  %v202 = vld [vmem:[%s201] sm:$0xff]
  %s203 = scalar_lea.vmem %s1, 1344
  %204 = vst [vmem:[%s203] sm:$0xff] %v202
  %s205 = scalar_lea.vmem %s0, 1504
  %v206 = vld [vmem:[%s205] sm:$0xff]
  %s207 = scalar_lea.vmem %s1, 1824
  %208 = vst [vmem:[%s207] sm:$0xff] %v206
  %s209 = scalar_lea.vmem %s0, 32
  %v210 = vld [vmem:[%s209] sm:$0xff]
  %s211 = scalar_lea.vmem %s1, 416
  %212 = vst [vmem:[%s211] sm:$0xff] %v210
  %s213 = scalar_lea.vmem %s0, 512
  %v214 = vld [vmem:[%s213] sm:$0xff]
  %s215 = scalar_lea.vmem %s1, 896
  %216 = vst [vmem:[%s215] sm:$0xff] %v214
  %s217 = scalar_lea.vmem %s0, 992
  %v218 = vld [vmem:[%s217] sm:$0xff]
  %s219 = scalar_lea.vmem %s1, 1376
  %220 = vst [vmem:[%s219] sm:$0xff] %v218
  %s221 = scalar_lea.vmem %s0, 1472
  %v222 = vld [vmem:[%s221] sm:$0xff]
  %s223 = scalar_lea.vmem %s1, 1856
  %224 = vst [vmem:[%s223] sm:$0xff] %v222
  %v225 = vld [vmem:[%s0] sm:$0xff]
  %s226 = scalar_lea.vmem %s1, 448
  %227 = vst [vmem:[%s226] sm:$0xff] %v225
  %s228 = scalar_lea.vmem %s0, 480
  %v229 = vld [vmem:[%s228] sm:$0xff]
  %s230 = scalar_lea.vmem %s1, 928
  %231 = vst [vmem:[%s230] sm:$0xff] %v229
  %s232 = scalar_lea.vmem %s0, 960
  %v233 = vld [vmem:[%s232] sm:$0xff]
  %s234 = scalar_lea.vmem %s1, 1408
  %235 = vst [vmem:[%s234] sm:$0xff] %v233
  %s236 = scalar_lea.vmem %s0, 1440
  %v237 = vld [vmem:[%s236] sm:$0xff]
  %s238 = scalar_lea.vmem %s1, 1888
  %239 = vst [vmem:[%s238] sm:$0xff] %v237
  %s240 = scalar_lea.vmem %s0, 456
  %v241 = vld [vmem:[%s240] sm:$0xff]
  %s242 = scalar_lea.vmem %s1, 8
  %243 = vst [vmem:[%s242] sm:$0xff] %v241
  %s244 = scalar_lea.vmem %s0, 936
  %v245 = vld [vmem:[%s244] sm:$0xff]
  %s246 = scalar_lea.vmem %s1, 488
  %247 = vst [vmem:[%s246] sm:$0xff] %v245
  %s248 = scalar_lea.vmem %s0, 1416
  %v249 = vld [vmem:[%s248] sm:$0xff]
  %s250 = scalar_lea.vmem %s1, 968
  %251 = vst [vmem:[%s250] sm:$0xff] %v249
  %s252 = scalar_lea.vmem %s0, 1896
  %v253 = vld [vmem:[%s252] sm:$0xff]
  %s254 = scalar_lea.vmem %s1, 1448
  %255 = vst [vmem:[%s254] sm:$0xff] %v253
  %s256 = scalar_lea.vmem %s0, 424
  %v257 = vld [vmem:[%s256] sm:$0xff]
  %s258 = scalar_lea.vmem %s1, 40
  %259 = vst [vmem:[%s258] sm:$0xff] %v257
  %s260 = scalar_lea.vmem %s0, 904
  %v261 = vld [vmem:[%s260] sm:$0xff]
  %s262 = scalar_lea.vmem %s1, 520
  %263 = vst [vmem:[%s262] sm:$0xff] %v261
  %s264 = scalar_lea.vmem %s0, 1384
  %v265 = vld [vmem:[%s264] sm:$0xff]
  %s266 = scalar_lea.vmem %s1, 1000
  %267 = vst [vmem:[%s266] sm:$0xff] %v265
  %s268 = scalar_lea.vmem %s0, 1864
  %v269 = vld [vmem:[%s268] sm:$0xff]
  %s270 = scalar_lea.vmem %s1, 1480
  %271 = vst [vmem:[%s270] sm:$0xff] %v269
  %s272 = scalar_lea.vmem %s0, 392
  %v273 = vld [vmem:[%s272] sm:$0xff]
  %s274 = scalar_lea.vmem %s1, 72
  %275 = vst [vmem:[%s274] sm:$0xff] %v273
  %s276 = scalar_lea.vmem %s0, 872
  %v277 = vld [vmem:[%s276] sm:$0xff]
  %s278 = scalar_lea.vmem %s1, 552
  %279 = vst [vmem:[%s278] sm:$0xff] %v277
  %s280 = scalar_lea.vmem %s0, 1352
  %v281 = vld [vmem:[%s280] sm:$0xff]
  %s282 = scalar_lea.vmem %s1, 1032
  %283 = vst [vmem:[%s282] sm:$0xff] %v281
  %s284 = scalar_lea.vmem %s0, 1832
  %v285 = vld [vmem:[%s284] sm:$0xff]
  %s286 = scalar_lea.vmem %s1, 1512
  %287 = vst [vmem:[%s286] sm:$0xff] %v285
  %s288 = scalar_lea.vmem %s0, 360
  %v289 = vld [vmem:[%s288] sm:$0xff]
  %s290 = scalar_lea.vmem %s1, 104
  %291 = vst [vmem:[%s290] sm:$0xff] %v289
  %s292 = scalar_lea.vmem %s0, 840
  %v293 = vld [vmem:[%s292] sm:$0xff]
  %s294 = scalar_lea.vmem %s1, 584
  %295 = vst [vmem:[%s294] sm:$0xff] %v293
  %s296 = scalar_lea.vmem %s0, 1320
  %v297 = vld [vmem:[%s296] sm:$0xff]
  %s298 = scalar_lea.vmem %s1, 1064
  %299 = vst [vmem:[%s298] sm:$0xff] %v297
  %s300 = scalar_lea.vmem %s0, 1800
  %v301 = vld [vmem:[%s300] sm:$0xff]
  %s302 = scalar_lea.vmem %s1, 1544
  %303 = vst [vmem:[%s302] sm:$0xff] %v301
  %s304 = scalar_lea.vmem %s0, 328
  %v305 = vld [vmem:[%s304] sm:$0xff]
  %s306 = scalar_lea.vmem %s1, 136
  %307 = vst [vmem:[%s306] sm:$0xff] %v305
  %s308 = scalar_lea.vmem %s0, 808
  %v309 = vld [vmem:[%s308] sm:$0xff]
  %s310 = scalar_lea.vmem %s1, 616
  %311 = vst [vmem:[%s310] sm:$0xff] %v309
  %s312 = scalar_lea.vmem %s0, 1288
  %v313 = vld [vmem:[%s312] sm:$0xff]
  %s314 = scalar_lea.vmem %s1, 1096
  %315 = vst [vmem:[%s314] sm:$0xff] %v313
  %s316 = scalar_lea.vmem %s0, 1768
  %v317 = vld [vmem:[%s316] sm:$0xff]
  %s318 = scalar_lea.vmem %s1, 1576
  %319 = vst [vmem:[%s318] sm:$0xff] %v317
  %s320 = scalar_lea.vmem %s0, 296
  %v321 = vld [vmem:[%s320] sm:$0xff]
  %s322 = scalar_lea.vmem %s1, 168
  %323 = vst [vmem:[%s322] sm:$0xff] %v321
  %s324 = scalar_lea.vmem %s0, 776
  %v325 = vld [vmem:[%s324] sm:$0xff]
  %s326 = scalar_lea.vmem %s1, 648
  %327 = vst [vmem:[%s326] sm:$0xff] %v325
  %s328 = scalar_lea.vmem %s0, 1256
  %v329 = vld [vmem:[%s328] sm:$0xff]
  %s330 = scalar_lea.vmem %s1, 1128
  %331 = vst [vmem:[%s330] sm:$0xff] %v329
  %s332 = scalar_lea.vmem %s0, 1736
  %v333 = vld [vmem:[%s332] sm:$0xff]
  %s334 = scalar_lea.vmem %s1, 1608
  %335 = vst [vmem:[%s334] sm:$0xff] %v333
  %s336 = scalar_lea.vmem %s0, 264
  %v337 = vld [vmem:[%s336] sm:$0xff]
  %s338 = scalar_lea.vmem %s1, 200
  %339 = vst [vmem:[%s338] sm:$0xff] %v337
  %s340 = scalar_lea.vmem %s0, 744
  %v341 = vld [vmem:[%s340] sm:$0xff]
  %s342 = scalar_lea.vmem %s1, 680
  %343 = vst [vmem:[%s342] sm:$0xff] %v341
  %s344 = scalar_lea.vmem %s0, 1224
  %v345 = vld [vmem:[%s344] sm:$0xff]
  %s346 = scalar_lea.vmem %s1, 1160
  %347 = vst [vmem:[%s346] sm:$0xff] %v345
  %s348 = scalar_lea.vmem %s0, 1704
  %v349 = vld [vmem:[%s348] sm:$0xff]
  %s350 = scalar_lea.vmem %s1, 1640
  %351 = vst [vmem:[%s350] sm:$0xff] %v349
  %s352 = scalar_lea.vmem %s0, 232
  %v353 = vld [vmem:[%s352] sm:$0xff]
  %s354 = scalar_lea.vmem %s1, 232
  %355 = vst [vmem:[%s354] sm:$0xff] %v353
  %s356 = scalar_lea.vmem %s0, 712
  %v357 = vld [vmem:[%s356] sm:$0xff]
  %s358 = scalar_lea.vmem %s1, 712
  %359 = vst [vmem:[%s358] sm:$0xff] %v357
  %s360 = scalar_lea.vmem %s0, 1192
  %v361 = vld [vmem:[%s360] sm:$0xff]
  %s362 = scalar_lea.vmem %s1, 1192
  %363 = vst [vmem:[%s362] sm:$0xff] %v361
  %s364 = scalar_lea.vmem %s0, 1672
  %v365 = vld [vmem:[%s364] sm:$0xff]
  %s366 = scalar_lea.vmem %s1, 1672
  %367 = vst [vmem:[%s366] sm:$0xff] %v365
  %s368 = scalar_lea.vmem %s0, 200
  %v369 = vld [vmem:[%s368] sm:$0xff]
  %s370 = scalar_lea.vmem %s1, 264
  %371 = vst [vmem:[%s370] sm:$0xff] %v369
  %s372 = scalar_lea.vmem %s0, 680
  %v373 = vld [vmem:[%s372] sm:$0xff]
  %s374 = scalar_lea.vmem %s1, 744
  %375 = vst [vmem:[%s374] sm:$0xff] %v373
  %s376 = scalar_lea.vmem %s0, 1160
  %v377 = vld [vmem:[%s376] sm:$0xff]
  %s378 = scalar_lea.vmem %s1, 1224
  %379 = vst [vmem:[%s378] sm:$0xff] %v377
  %s380 = scalar_lea.vmem %s0, 1640
  %v381 = vld [vmem:[%s380] sm:$0xff]
  %s382 = scalar_lea.vmem %s1, 1704
  %383 = vst [vmem:[%s382] sm:$0xff] %v381
  %s384 = scalar_lea.vmem %s0, 168
  %v385 = vld [vmem:[%s384] sm:$0xff]
  %s386 = scalar_lea.vmem %s1, 296
  %387 = vst [vmem:[%s386] sm:$0xff] %v385
  %s388 = scalar_lea.vmem %s0, 648
  %v389 = vld [vmem:[%s388] sm:$0xff]
  %s390 = scalar_lea.vmem %s1, 776
  %391 = vst [vmem:[%s390] sm:$0xff] %v389
  %s392 = scalar_lea.vmem %s0, 1128
  %v393 = vld [vmem:[%s392] sm:$0xff]
  %s394 = scalar_lea.vmem %s1, 1256
  %395 = vst [vmem:[%s394] sm:$0xff] %v393
  %s396 = scalar_lea.vmem %s0, 1608
  %v397 = vld [vmem:[%s396] sm:$0xff]
  %s398 = scalar_lea.vmem %s1, 1736
  %399 = vst [vmem:[%s398] sm:$0xff] %v397
  %s400 = scalar_lea.vmem %s0, 136
  %v401 = vld [vmem:[%s400] sm:$0xff]
  %s402 = scalar_lea.vmem %s1, 328
  %403 = vst [vmem:[%s402] sm:$0xff] %v401
  %s404 = scalar_lea.vmem %s0, 616
  %v405 = vld [vmem:[%s404] sm:$0xff]
  %s406 = scalar_lea.vmem %s1, 808
  %407 = vst [vmem:[%s406] sm:$0xff] %v405
  %s408 = scalar_lea.vmem %s0, 1096
  %v409 = vld [vmem:[%s408] sm:$0xff]
  %s410 = scalar_lea.vmem %s1, 1288
  %411 = vst [vmem:[%s410] sm:$0xff] %v409
  %s412 = scalar_lea.vmem %s0, 1576
  %v413 = vld [vmem:[%s412] sm:$0xff]
  %s414 = scalar_lea.vmem %s1, 1768
  %415 = vst [vmem:[%s414] sm:$0xff] %v413
  %s416 = scalar_lea.vmem %s0, 104
  %v417 = vld [vmem:[%s416] sm:$0xff]
  %s418 = scalar_lea.vmem %s1, 360
  %419 = vst [vmem:[%s418] sm:$0xff] %v417
  %s420 = scalar_lea.vmem %s0, 584
  %v421 = vld [vmem:[%s420] sm:$0xff]
  %s422 = scalar_lea.vmem %s1, 840
  %423 = vst [vmem:[%s422] sm:$0xff] %v421
  %s424 = scalar_lea.vmem %s0, 1064
  %v425 = vld [vmem:[%s424] sm:$0xff]
  %s426 = scalar_lea.vmem %s1, 1320
  %427 = vst [vmem:[%s426] sm:$0xff] %v425
  %s428 = scalar_lea.vmem %s0, 1544
  %v429 = vld [vmem:[%s428] sm:$0xff]
  %s430 = scalar_lea.vmem %s1, 1800
  %431 = vst [vmem:[%s430] sm:$0xff] %v429
  %s432 = scalar_lea.vmem %s0, 72
  %v433 = vld [vmem:[%s432] sm:$0xff]
  %s434 = scalar_lea.vmem %s1, 392
  %435 = vst [vmem:[%s434] sm:$0xff] %v433
  %s436 = scalar_lea.vmem %s0, 552
  %v437 = vld [vmem:[%s436] sm:$0xff]
  %s438 = scalar_lea.vmem %s1, 872
  %439 = vst [vmem:[%s438] sm:$0xff] %v437
  %s440 = scalar_lea.vmem %s0, 1032
  %v441 = vld [vmem:[%s440] sm:$0xff]
  %s442 = scalar_lea.vmem %s1, 1352
  %443 = vst [vmem:[%s442] sm:$0xff] %v441
  %s444 = scalar_lea.vmem %s0, 1512
  %v445 = vld [vmem:[%s444] sm:$0xff]
  %s446 = scalar_lea.vmem %s1, 1832
  %447 = vst [vmem:[%s446] sm:$0xff] %v445
  %s448 = scalar_lea.vmem %s0, 40
  %v449 = vld [vmem:[%s448] sm:$0xff]
  %s450 = scalar_lea.vmem %s1, 424
  %451 = vst [vmem:[%s450] sm:$0xff] %v449
  %s452 = scalar_lea.vmem %s0, 520
  %v453 = vld [vmem:[%s452] sm:$0xff]
  %s454 = scalar_lea.vmem %s1, 904
  %455 = vst [vmem:[%s454] sm:$0xff] %v453
  %s456 = scalar_lea.vmem %s0, 1000
  %v457 = vld [vmem:[%s456] sm:$0xff]
  %s458 = scalar_lea.vmem %s1, 1384
  %459 = vst [vmem:[%s458] sm:$0xff] %v457
  %s460 = scalar_lea.vmem %s0, 1480
  %v461 = vld [vmem:[%s460] sm:$0xff]
  %s462 = scalar_lea.vmem %s1, 1864
  %463 = vst [vmem:[%s462] sm:$0xff] %v461
  %s464 = scalar_lea.vmem %s0, 8
  %v465 = vld [vmem:[%s464] sm:$0xff]
  %s466 = scalar_lea.vmem %s1, 456
  %467 = vst [vmem:[%s466] sm:$0xff] %v465
  %s468 = scalar_lea.vmem %s0, 488
  %v469 = vld [vmem:[%s468] sm:$0xff]
  %s470 = scalar_lea.vmem %s1, 936
  %471 = vst [vmem:[%s470] sm:$0xff] %v469
  %s472 = scalar_lea.vmem %s0, 968
  %v473 = vld [vmem:[%s472] sm:$0xff]
  %s474 = scalar_lea.vmem %s1, 1416
  %475 = vst [vmem:[%s474] sm:$0xff] %v473
  %s476 = scalar_lea.vmem %s0, 1448
  %v477 = vld [vmem:[%s476] sm:$0xff]
  %s478 = scalar_lea.vmem %s1, 1896
  %479 = vst [vmem:[%s478] sm:$0xff] %v477
  %s480 = scalar_lea.vmem %s0, 464
  %v481 = vld [vmem:[%s480] sm:$0xff]
  %s482 = scalar_lea.vmem %s1, 16
  %483 = vst [vmem:[%s482] sm:$0xff] %v481
  %s484 = scalar_lea.vmem %s0, 944
  %v485 = vld [vmem:[%s484] sm:$0xff]
  %s486 = scalar_lea.vmem %s1, 496
  %487 = vst [vmem:[%s486] sm:$0xff] %v485
  %s488 = scalar_lea.vmem %s0, 1424
  %v489 = vld [vmem:[%s488] sm:$0xff]
  %s490 = scalar_lea.vmem %s1, 976
  %491 = vst [vmem:[%s490] sm:$0xff] %v489
  %s492 = scalar_lea.vmem %s0, 1904
  %v493 = vld [vmem:[%s492] sm:$0xff]
  %s494 = scalar_lea.vmem %s1, 1456
  %495 = vst [vmem:[%s494] sm:$0xff] %v493
  %s496 = scalar_lea.vmem %s0, 432
  %v497 = vld [vmem:[%s496] sm:$0xff]
  %s498 = scalar_lea.vmem %s1, 48
  %499 = vst [vmem:[%s498] sm:$0xff] %v497
  %s500 = scalar_lea.vmem %s0, 912
  %v501 = vld [vmem:[%s500] sm:$0xff]
  %s502 = scalar_lea.vmem %s1, 528
  %503 = vst [vmem:[%s502] sm:$0xff] %v501
  %s504 = scalar_lea.vmem %s0, 1392
  %v505 = vld [vmem:[%s504] sm:$0xff]
  %s506 = scalar_lea.vmem %s1, 1008
  %507 = vst [vmem:[%s506] sm:$0xff] %v505
  %s508 = scalar_lea.vmem %s0, 1872
  %v509 = vld [vmem:[%s508] sm:$0xff]
  %s510 = scalar_lea.vmem %s1, 1488
  %511 = vst [vmem:[%s510] sm:$0xff] %v509
  %s512 = scalar_lea.vmem %s0, 400
  %v513 = vld [vmem:[%s512] sm:$0xff]
  %s514 = scalar_lea.vmem %s1, 80
  %515 = vst [vmem:[%s514] sm:$0xff] %v513
  %s516 = scalar_lea.vmem %s0, 880
  %v517 = vld [vmem:[%s516] sm:$0xff]
  %s518 = scalar_lea.vmem %s1, 560
  %519 = vst [vmem:[%s518] sm:$0xff] %v517
  %s520 = scalar_lea.vmem %s0, 1360
  %v521 = vld [vmem:[%s520] sm:$0xff]
  %s522 = scalar_lea.vmem %s1, 1040
  %523 = vst [vmem:[%s522] sm:$0xff] %v521
  %s524 = scalar_lea.vmem %s0, 1840
  %v525 = vld [vmem:[%s524] sm:$0xff]
  %s526 = scalar_lea.vmem %s1, 1520
  %527 = vst [vmem:[%s526] sm:$0xff] %v525
  %s528 = scalar_lea.vmem %s0, 368
  %v529 = vld [vmem:[%s528] sm:$0xff]
  %s530 = scalar_lea.vmem %s1, 112
  %531 = vst [vmem:[%s530] sm:$0xff] %v529
  %s532 = scalar_lea.vmem %s0, 848
  %v533 = vld [vmem:[%s532] sm:$0xff]
  %s534 = scalar_lea.vmem %s1, 592
  %535 = vst [vmem:[%s534] sm:$0xff] %v533
  %s536 = scalar_lea.vmem %s0, 1328
  %v537 = vld [vmem:[%s536] sm:$0xff]
  %s538 = scalar_lea.vmem %s1, 1072
  %539 = vst [vmem:[%s538] sm:$0xff] %v537
  %s540 = scalar_lea.vmem %s0, 1808
  %v541 = vld [vmem:[%s540] sm:$0xff]
  %s542 = scalar_lea.vmem %s1, 1552
  %543 = vst [vmem:[%s542] sm:$0xff] %v541
  %s544 = scalar_lea.vmem %s0, 336
  %v545 = vld [vmem:[%s544] sm:$0xff]
  %s546 = scalar_lea.vmem %s1, 144
  %547 = vst [vmem:[%s546] sm:$0xff] %v545
  %s548 = scalar_lea.vmem %s0, 816
  %v549 = vld [vmem:[%s548] sm:$0xff]
  %s550 = scalar_lea.vmem %s1, 624
  %551 = vst [vmem:[%s550] sm:$0xff] %v549
  %s552 = scalar_lea.vmem %s0, 1296
  %v553 = vld [vmem:[%s552] sm:$0xff]
  %s554 = scalar_lea.vmem %s1, 1104
  %555 = vst [vmem:[%s554] sm:$0xff] %v553
  %s556 = scalar_lea.vmem %s0, 1776
  %v557 = vld [vmem:[%s556] sm:$0xff]
  %s558 = scalar_lea.vmem %s1, 1584
  %559 = vst [vmem:[%s558] sm:$0xff] %v557
  %s560 = scalar_lea.vmem %s0, 304
  %v561 = vld [vmem:[%s560] sm:$0xff]
  %s562 = scalar_lea.vmem %s1, 176
  %563 = vst [vmem:[%s562] sm:$0xff] %v561
  %s564 = scalar_lea.vmem %s0, 784
  %v565 = vld [vmem:[%s564] sm:$0xff]
  %s566 = scalar_lea.vmem %s1, 656
  %567 = vst [vmem:[%s566] sm:$0xff] %v565
  %s568 = scalar_lea.vmem %s0, 1264
  %v569 = vld [vmem:[%s568] sm:$0xff]
  %s570 = scalar_lea.vmem %s1, 1136
  %571 = vst [vmem:[%s570] sm:$0xff] %v569
  %s572 = scalar_lea.vmem %s0, 1744
  %v573 = vld [vmem:[%s572] sm:$0xff]
  %s574 = scalar_lea.vmem %s1, 1616
  %575 = vst [vmem:[%s574] sm:$0xff] %v573
  %s576 = scalar_lea.vmem %s0, 272
  %v577 = vld [vmem:[%s576] sm:$0xff]
  %s578 = scalar_lea.vmem %s1, 208
  %579 = vst [vmem:[%s578] sm:$0xff] %v577
  %s580 = scalar_lea.vmem %s0, 752
  %v581 = vld [vmem:[%s580] sm:$0xff]
  %s582 = scalar_lea.vmem %s1, 688
  %583 = vst [vmem:[%s582] sm:$0xff] %v581
  %s584 = scalar_lea.vmem %s0, 1232
  %v585 = vld [vmem:[%s584] sm:$0xff]
  %s586 = scalar_lea.vmem %s1, 1168
  %587 = vst [vmem:[%s586] sm:$0xff] %v585
  %s588 = scalar_lea.vmem %s0, 1712
  %v589 = vld [vmem:[%s588] sm:$0xff]
  %s590 = scalar_lea.vmem %s1, 1648
  %591 = vst [vmem:[%s590] sm:$0xff] %v589
  %s592 = scalar_lea.vmem %s0, 240
  %v593 = vld [vmem:[%s592] sm:$0xff]
  %s594 = scalar_lea.vmem %s1, 240
  %595 = vst [vmem:[%s594] sm:$0xff] %v593
  %s596 = scalar_lea.vmem %s0, 720
  %v597 = vld [vmem:[%s596] sm:$0xff]
  %s598 = scalar_lea.vmem %s1, 720
  %599 = vst [vmem:[%s598] sm:$0xff] %v597
  %s600 = scalar_lea.vmem %s0, 1200
  %v601 = vld [vmem:[%s600] sm:$0xff]
  %s602 = scalar_lea.vmem %s1, 1200
  %603 = vst [vmem:[%s602] sm:$0xff] %v601
  %s604 = scalar_lea.vmem %s0, 1680
  %v605 = vld [vmem:[%s604] sm:$0xff]
  %s606 = scalar_lea.vmem %s1, 1680
  %607 = vst [vmem:[%s606] sm:$0xff] %v605
  %s608 = scalar_lea.vmem %s0, 208
  %v609 = vld [vmem:[%s608] sm:$0xff]
  %s610 = scalar_lea.vmem %s1, 272
  %611 = vst [vmem:[%s610] sm:$0xff] %v609
  %s612 = scalar_lea.vmem %s0, 688
  %v613 = vld [vmem:[%s612] sm:$0xff]
  %s614 = scalar_lea.vmem %s1, 752
  %615 = vst [vmem:[%s614] sm:$0xff] %v613
  %s616 = scalar_lea.vmem %s0, 1168
  %v617 = vld [vmem:[%s616] sm:$0xff]
  %s618 = scalar_lea.vmem %s1, 1232
  %619 = vst [vmem:[%s618] sm:$0xff] %v617
  %s620 = scalar_lea.vmem %s0, 1648
  %v621 = vld [vmem:[%s620] sm:$0xff]
  %s622 = scalar_lea.vmem %s1, 1712
  %623 = vst [vmem:[%s622] sm:$0xff] %v621
  %s624 = scalar_lea.vmem %s0, 176
  %v625 = vld [vmem:[%s624] sm:$0xff]
  %s626 = scalar_lea.vmem %s1, 304
  %627 = vst [vmem:[%s626] sm:$0xff] %v625
  %s628 = scalar_lea.vmem %s0, 656
  %v629 = vld [vmem:[%s628] sm:$0xff]
  %s630 = scalar_lea.vmem %s1, 784
  %631 = vst [vmem:[%s630] sm:$0xff] %v629
  %s632 = scalar_lea.vmem %s0, 1136
  %v633 = vld [vmem:[%s632] sm:$0xff]
  %s634 = scalar_lea.vmem %s1, 1264
  %635 = vst [vmem:[%s634] sm:$0xff] %v633
  %s636 = scalar_lea.vmem %s0, 1616
  %v637 = vld [vmem:[%s636] sm:$0xff]
  %s638 = scalar_lea.vmem %s1, 1744
  %639 = vst [vmem:[%s638] sm:$0xff] %v637
  %s640 = scalar_lea.vmem %s0, 144
  %v641 = vld [vmem:[%s640] sm:$0xff]
  %s642 = scalar_lea.vmem %s1, 336
  %643 = vst [vmem:[%s642] sm:$0xff] %v641
  %s644 = scalar_lea.vmem %s0, 624
  %v645 = vld [vmem:[%s644] sm:$0xff]
  %s646 = scalar_lea.vmem %s1, 816
  %647 = vst [vmem:[%s646] sm:$0xff] %v645
  %s648 = scalar_lea.vmem %s0, 1104
  %v649 = vld [vmem:[%s648] sm:$0xff]
  %s650 = scalar_lea.vmem %s1, 1296
  %651 = vst [vmem:[%s650] sm:$0xff] %v649
  %s652 = scalar_lea.vmem %s0, 1584
  %v653 = vld [vmem:[%s652] sm:$0xff]
  %s654 = scalar_lea.vmem %s1, 1776
  %655 = vst [vmem:[%s654] sm:$0xff] %v653
  %s656 = scalar_lea.vmem %s0, 112
  %v657 = vld [vmem:[%s656] sm:$0xff]
  %s658 = scalar_lea.vmem %s1, 368
  %659 = vst [vmem:[%s658] sm:$0xff] %v657
  %s660 = scalar_lea.vmem %s0, 592
  %v661 = vld [vmem:[%s660] sm:$0xff]
  %s662 = scalar_lea.vmem %s1, 848
  %663 = vst [vmem:[%s662] sm:$0xff] %v661
  %s664 = scalar_lea.vmem %s0, 1072
  %v665 = vld [vmem:[%s664] sm:$0xff]
  %s666 = scalar_lea.vmem %s1, 1328
  %667 = vst [vmem:[%s666] sm:$0xff] %v665
  %s668 = scalar_lea.vmem %s0, 1552
  %v669 = vld [vmem:[%s668] sm:$0xff]
  %s670 = scalar_lea.vmem %s1, 1808
  %671 = vst [vmem:[%s670] sm:$0xff] %v669
  %s672 = scalar_lea.vmem %s0, 80
  %v673 = vld [vmem:[%s672] sm:$0xff]
  %s674 = scalar_lea.vmem %s1, 400
  %675 = vst [vmem:[%s674] sm:$0xff] %v673
  %s676 = scalar_lea.vmem %s0, 560
  %v677 = vld [vmem:[%s676] sm:$0xff]
  %s678 = scalar_lea.vmem %s1, 880
  %679 = vst [vmem:[%s678] sm:$0xff] %v677
  %s680 = scalar_lea.vmem %s0, 1040
  %v681 = vld [vmem:[%s680] sm:$0xff]
  %s682 = scalar_lea.vmem %s1, 1360
  %683 = vst [vmem:[%s682] sm:$0xff] %v681
  %s684 = scalar_lea.vmem %s0, 1520
  %v685 = vld [vmem:[%s684] sm:$0xff]
  %s686 = scalar_lea.vmem %s1, 1840
  %687 = vst [vmem:[%s686] sm:$0xff] %v685
  %s688 = scalar_lea.vmem %s0, 48
  %v689 = vld [vmem:[%s688] sm:$0xff]
  %s690 = scalar_lea.vmem %s1, 432
  %691 = vst [vmem:[%s690] sm:$0xff] %v689
  %s692 = scalar_lea.vmem %s0, 528
  %v693 = vld [vmem:[%s692] sm:$0xff]
  %s694 = scalar_lea.vmem %s1, 912
  %695 = vst [vmem:[%s694] sm:$0xff] %v693
  %s696 = scalar_lea.vmem %s0, 1008
  %v697 = vld [vmem:[%s696] sm:$0xff]
  %s698 = scalar_lea.vmem %s1, 1392
  %699 = vst [vmem:[%s698] sm:$0xff] %v697
  %s700 = scalar_lea.vmem %s0, 1488
  %v701 = vld [vmem:[%s700] sm:$0xff]
  %s702 = scalar_lea.vmem %s1, 1872
  %703 = vst [vmem:[%s702] sm:$0xff] %v701
  %s704 = scalar_lea.vmem %s0, 16
  %v705 = vld [vmem:[%s704] sm:$0xff]
  %s706 = scalar_lea.vmem %s1, 464
  %707 = vst [vmem:[%s706] sm:$0xff] %v705
  %s708 = scalar_lea.vmem %s0, 496
  %v709 = vld [vmem:[%s708] sm:$0xff]
  %s710 = scalar_lea.vmem %s1, 944
  %711 = vst [vmem:[%s710] sm:$0xff] %v709
  %s712 = scalar_lea.vmem %s0, 976
  %v713 = vld [vmem:[%s712] sm:$0xff]
  %s714 = scalar_lea.vmem %s1, 1424
  %715 = vst [vmem:[%s714] sm:$0xff] %v713
  %s716 = scalar_lea.vmem %s0, 1456
  %v717 = vld [vmem:[%s716] sm:$0xff]
  %s718 = scalar_lea.vmem %s1, 1904
  %719 = vst [vmem:[%s718] sm:$0xff] %v717
  %s720 = scalar_lea.vmem %s0, 472
  %v721 = vld [vmem:[%s720] sm:$0xff]
  %s722 = scalar_lea.vmem %s1, 24
  %723 = vst [vmem:[%s722] sm:$0xff] %v721
  %s724 = scalar_lea.vmem %s0, 952
  %v725 = vld [vmem:[%s724] sm:$0xff]
  %s726 = scalar_lea.vmem %s1, 504
  %727 = vst [vmem:[%s726] sm:$0xff] %v725
  %s728 = scalar_lea.vmem %s0, 1432
  %v729 = vld [vmem:[%s728] sm:$0xff]
  %s730 = scalar_lea.vmem %s1, 984
  %731 = vst [vmem:[%s730] sm:$0xff] %v729
  %s732 = scalar_lea.vmem %s0, 1912
  %v733 = vld [vmem:[%s732] sm:$0xff]
  %s734 = scalar_lea.vmem %s1, 1464
  %735 = vst [vmem:[%s734] sm:$0xff] %v733
  %s736 = scalar_lea.vmem %s0, 440
  %v737 = vld [vmem:[%s736] sm:$0xff]
  %s738 = scalar_lea.vmem %s1, 56
  %739 = vst [vmem:[%s738] sm:$0xff] %v737
  %s740 = scalar_lea.vmem %s0, 920
  %v741 = vld [vmem:[%s740] sm:$0xff]
  %s742 = scalar_lea.vmem %s1, 536
  %743 = vst [vmem:[%s742] sm:$0xff] %v741
  %s744 = scalar_lea.vmem %s0, 1400
  %v745 = vld [vmem:[%s744] sm:$0xff]
  %s746 = scalar_lea.vmem %s1, 1016
  %747 = vst [vmem:[%s746] sm:$0xff] %v745
  %s748 = scalar_lea.vmem %s0, 1880
  %v749 = vld [vmem:[%s748] sm:$0xff]
  %s750 = scalar_lea.vmem %s1, 1496
  %751 = vst [vmem:[%s750] sm:$0xff] %v749
  %s752 = scalar_lea.vmem %s0, 408
  %v753 = vld [vmem:[%s752] sm:$0xff]
  %s754 = scalar_lea.vmem %s1, 88
  %755 = vst [vmem:[%s754] sm:$0xff] %v753
  %s756 = scalar_lea.vmem %s0, 888
  %v757 = vld [vmem:[%s756] sm:$0xff]
  %s758 = scalar_lea.vmem %s1, 568
  %759 = vst [vmem:[%s758] sm:$0xff] %v757
  %s760 = scalar_lea.vmem %s0, 1368
  %v761 = vld [vmem:[%s760] sm:$0xff]
  %s762 = scalar_lea.vmem %s1, 1048
  %763 = vst [vmem:[%s762] sm:$0xff] %v761
  %s764 = scalar_lea.vmem %s0, 1848
  %v765 = vld [vmem:[%s764] sm:$0xff]
  %s766 = scalar_lea.vmem %s1, 1528
  %767 = vst [vmem:[%s766] sm:$0xff] %v765
  %s768 = scalar_lea.vmem %s0, 376
  %v769 = vld [vmem:[%s768] sm:$0xff]
  %s770 = scalar_lea.vmem %s1, 120
  %771 = vst [vmem:[%s770] sm:$0xff] %v769
  %s772 = scalar_lea.vmem %s0, 856
  %v773 = vld [vmem:[%s772] sm:$0xff]
  %s774 = scalar_lea.vmem %s1, 600
  %775 = vst [vmem:[%s774] sm:$0xff] %v773
  %s776 = scalar_lea.vmem %s0, 1336
  %v777 = vld [vmem:[%s776] sm:$0xff]
  %s778 = scalar_lea.vmem %s1, 1080
  %779 = vst [vmem:[%s778] sm:$0xff] %v777
  %s780 = scalar_lea.vmem %s0, 1816
  %v781 = vld [vmem:[%s780] sm:$0xff]
  %s782 = scalar_lea.vmem %s1, 1560
  %783 = vst [vmem:[%s782] sm:$0xff] %v781
  %s784 = scalar_lea.vmem %s0, 344
  %v785 = vld [vmem:[%s784] sm:$0xff]
  %s786 = scalar_lea.vmem %s1, 152
  %787 = vst [vmem:[%s786] sm:$0xff] %v785
  %s788 = scalar_lea.vmem %s0, 824
  %v789 = vld [vmem:[%s788] sm:$0xff]
  %s790 = scalar_lea.vmem %s1, 632
  %791 = vst [vmem:[%s790] sm:$0xff] %v789
  %s792 = scalar_lea.vmem %s0, 1304
  %v793 = vld [vmem:[%s792] sm:$0xff]
  %s794 = scalar_lea.vmem %s1, 1112
  %795 = vst [vmem:[%s794] sm:$0xff] %v793
  %s796 = scalar_lea.vmem %s0, 1784
  %v797 = vld [vmem:[%s796] sm:$0xff]
  %s798 = scalar_lea.vmem %s1, 1592
  %799 = vst [vmem:[%s798] sm:$0xff] %v797
  %s800 = scalar_lea.vmem %s0, 312
  %v801 = vld [vmem:[%s800] sm:$0xff]
  %s802 = scalar_lea.vmem %s1, 184
  %803 = vst [vmem:[%s802] sm:$0xff] %v801
  %s804 = scalar_lea.vmem %s0, 792
  %v805 = vld [vmem:[%s804] sm:$0xff]
  %s806 = scalar_lea.vmem %s1, 664
  %807 = vst [vmem:[%s806] sm:$0xff] %v805
  %s808 = scalar_lea.vmem %s0, 1272
  %v809 = vld [vmem:[%s808] sm:$0xff]
  %s810 = scalar_lea.vmem %s1, 1144
  %811 = vst [vmem:[%s810] sm:$0xff] %v809
  %s812 = scalar_lea.vmem %s0, 1752
  %v813 = vld [vmem:[%s812] sm:$0xff]
  %s814 = scalar_lea.vmem %s1, 1624
  %815 = vst [vmem:[%s814] sm:$0xff] %v813
  %s816 = scalar_lea.vmem %s0, 280
  %v817 = vld [vmem:[%s816] sm:$0xff]
  %s818 = scalar_lea.vmem %s1, 216
  %819 = vst [vmem:[%s818] sm:$0xff] %v817
  %s820 = scalar_lea.vmem %s0, 760
  %v821 = vld [vmem:[%s820] sm:$0xff]
  %s822 = scalar_lea.vmem %s1, 696
  %823 = vst [vmem:[%s822] sm:$0xff] %v821
  %s824 = scalar_lea.vmem %s0, 1240
  %v825 = vld [vmem:[%s824] sm:$0xff]
  %s826 = scalar_lea.vmem %s1, 1176
  %827 = vst [vmem:[%s826] sm:$0xff] %v825
  %s828 = scalar_lea.vmem %s0, 1720
  %v829 = vld [vmem:[%s828] sm:$0xff]
  %s830 = scalar_lea.vmem %s1, 1656
  %831 = vst [vmem:[%s830] sm:$0xff] %v829
  %s832 = scalar_lea.vmem %s0, 248
  %v833 = vld [vmem:[%s832] sm:$0xff]
  %s834 = scalar_lea.vmem %s1, 248
  %835 = vst [vmem:[%s834] sm:$0xff] %v833
  %s836 = scalar_lea.vmem %s0, 728
  %v837 = vld [vmem:[%s836] sm:$0xff]
  %s838 = scalar_lea.vmem %s1, 728
  %839 = vst [vmem:[%s838] sm:$0xff] %v837
  %s840 = scalar_lea.vmem %s0, 1208
  %v841 = vld [vmem:[%s840] sm:$0xff]
  %s842 = scalar_lea.vmem %s1, 1208
  %843 = vst [vmem:[%s842] sm:$0xff] %v841
  %s844 = scalar_lea.vmem %s0, 1688
  %v845 = vld [vmem:[%s844] sm:$0xff]
  %s846 = scalar_lea.vmem %s1, 1688
  %847 = vst [vmem:[%s846] sm:$0xff] %v845
  %s848 = scalar_lea.vmem %s0, 216
  %v849 = vld [vmem:[%s848] sm:$0xff]
  %s850 = scalar_lea.vmem %s1, 280
  %851 = vst [vmem:[%s850] sm:$0xff] %v849
  %s852 = scalar_lea.vmem %s0, 696
  %v853 = vld [vmem:[%s852] sm:$0xff]
  %s854 = scalar_lea.vmem %s1, 760
  %855 = vst [vmem:[%s854] sm:$0xff] %v853
  %s856 = scalar_lea.vmem %s0, 1176
  %v857 = vld [vmem:[%s856] sm:$0xff]
  %s858 = scalar_lea.vmem %s1, 1240
  %859 = vst [vmem:[%s858] sm:$0xff] %v857
  %s860 = scalar_lea.vmem %s0, 1656
  %v861 = vld [vmem:[%s860] sm:$0xff]
  %s862 = scalar_lea.vmem %s1, 1720
  %863 = vst [vmem:[%s862] sm:$0xff] %v861
  %s864 = scalar_lea.vmem %s0, 184
  %v865 = vld [vmem:[%s864] sm:$0xff]
  %s866 = scalar_lea.vmem %s1, 312
  %867 = vst [vmem:[%s866] sm:$0xff] %v865
  %s868 = scalar_lea.vmem %s0, 664
  %v869 = vld [vmem:[%s868] sm:$0xff]
  %s870 = scalar_lea.vmem %s1, 792
  %871 = vst [vmem:[%s870] sm:$0xff] %v869
  %s872 = scalar_lea.vmem %s0, 1144
  %v873 = vld [vmem:[%s872] sm:$0xff]
  %s874 = scalar_lea.vmem %s1, 1272
  %875 = vst [vmem:[%s874] sm:$0xff] %v873
  %s876 = scalar_lea.vmem %s0, 1624
  %v877 = vld [vmem:[%s876] sm:$0xff]
  %s878 = scalar_lea.vmem %s1, 1752
  %879 = vst [vmem:[%s878] sm:$0xff] %v877
  %s880 = scalar_lea.vmem %s0, 152
  %v881 = vld [vmem:[%s880] sm:$0xff]
  %s882 = scalar_lea.vmem %s1, 344
  %883 = vst [vmem:[%s882] sm:$0xff] %v881
  %s884 = scalar_lea.vmem %s0, 632
  %v885 = vld [vmem:[%s884] sm:$0xff]
  %s886 = scalar_lea.vmem %s1, 824
  %887 = vst [vmem:[%s886] sm:$0xff] %v885
  %s888 = scalar_lea.vmem %s0, 1112
  %v889 = vld [vmem:[%s888] sm:$0xff]
  %s890 = scalar_lea.vmem %s1, 1304
  %891 = vst [vmem:[%s890] sm:$0xff] %v889
  %s892 = scalar_lea.vmem %s0, 1592
  %v893 = vld [vmem:[%s892] sm:$0xff]
  %s894 = scalar_lea.vmem %s1, 1784
  %895 = vst [vmem:[%s894] sm:$0xff] %v893
  %s896 = scalar_lea.vmem %s0, 120
  %v897 = vld [vmem:[%s896] sm:$0xff]
  %s898 = scalar_lea.vmem %s1, 376
  %899 = vst [vmem:[%s898] sm:$0xff] %v897
  %s900 = scalar_lea.vmem %s0, 600
  %v901 = vld [vmem:[%s900] sm:$0xff]
  %s902 = scalar_lea.vmem %s1, 856
  %903 = vst [vmem:[%s902] sm:$0xff] %v901
  %s904 = scalar_lea.vmem %s0, 1080
  %v905 = vld [vmem:[%s904] sm:$0xff]
  %s906 = scalar_lea.vmem %s1, 1336
  %907 = vst [vmem:[%s906] sm:$0xff] %v905
  %s908 = scalar_lea.vmem %s0, 1560
  %v909 = vld [vmem:[%s908] sm:$0xff]
  %s910 = scalar_lea.vmem %s1, 1816
  %911 = vst [vmem:[%s910] sm:$0xff] %v909
  %s912 = scalar_lea.vmem %s0, 88
  %v913 = vld [vmem:[%s912] sm:$0xff]
  %s914 = scalar_lea.vmem %s1, 408
  %915 = vst [vmem:[%s914] sm:$0xff] %v913
  %s916 = scalar_lea.vmem %s0, 568
  %v917 = vld [vmem:[%s916] sm:$0xff]
  %s918 = scalar_lea.vmem %s1, 888
  %919 = vst [vmem:[%s918] sm:$0xff] %v917
  %s920 = scalar_lea.vmem %s0, 1048
  %v921 = vld [vmem:[%s920] sm:$0xff]
  %s922 = scalar_lea.vmem %s1, 1368
  %923 = vst [vmem:[%s922] sm:$0xff] %v921
  %s924 = scalar_lea.vmem %s0, 1528
  %v925 = vld [vmem:[%s924] sm:$0xff]
  %s926 = scalar_lea.vmem %s1, 1848
  %927 = vst [vmem:[%s926] sm:$0xff] %v925
  %s928 = scalar_lea.vmem %s0, 56
  %v929 = vld [vmem:[%s928] sm:$0xff]
  %s930 = scalar_lea.vmem %s1, 440
  %931 = vst [vmem:[%s930] sm:$0xff] %v929
  %s932 = scalar_lea.vmem %s0, 536
  %v933 = vld [vmem:[%s932] sm:$0xff]
  %s934 = scalar_lea.vmem %s1, 920
  %935 = vst [vmem:[%s934] sm:$0xff] %v933
  %s936 = scalar_lea.vmem %s0, 1016
  %v937 = vld [vmem:[%s936] sm:$0xff]
  %s938 = scalar_lea.vmem %s1, 1400
  %939 = vst [vmem:[%s938] sm:$0xff] %v937
  %s940 = scalar_lea.vmem %s0, 1496
  %v941 = vld [vmem:[%s940] sm:$0xff]
  %s942 = scalar_lea.vmem %s1, 1880
  %943 = vst [vmem:[%s942] sm:$0xff] %v941
  %s944 = scalar_lea.vmem %s0, 24
  %v945 = vld [vmem:[%s944] sm:$0xff]
  %s946 = scalar_lea.vmem %s1, 472
  %947 = vst [vmem:[%s946] sm:$0xff] %v945
  %s948 = scalar_lea.vmem %s0, 504
  %v949 = vld [vmem:[%s948] sm:$0xff]
  %s950 = scalar_lea.vmem %s1, 952
  %951 = vst [vmem:[%s950] sm:$0xff] %v949
  %s952 = scalar_lea.vmem %s0, 984
  %v953 = vld [vmem:[%s952] sm:$0xff]
  %s954 = scalar_lea.vmem %s1, 1432
  %955 = vst [vmem:[%s954] sm:$0xff] %v953
  %s956 = scalar_lea.vmem %s0, 1464
  %v957 = vld [vmem:[%s956] sm:$0xff]
  %s958 = scalar_lea.vmem %s1, 1912
  %959 = vst [vmem:[%s958] sm:$0xff] %v957

// kernel: _lct_pipeline.3
$region0: #{_lct_pipeline.3}
  #allocation0 [shape = 'u32[]', space=smem, size = 0x4, offset = 0x4, fixed_abs, tag = 'smem constant byte address 0x4 - core index']
  #allocation1 [shape = 'u32[144,128]{1,0:T(1,128)}', space=vmem, size = 0x12000, scoped, tag = 'internal scratch']
  %s0 = inlined_call_operand.vmem [shape: bf16[16,16], index: 0, kind: input, shape index: {}]
  %s1 = inlined_call_operand.vmem [shape: bf16[4,16,256], index: 1, kind: input, shape index: {}]
  %s2 = inlined_call_operand.vmem [shape: f32[4,16,256], index: 2, kind: output, shape index: {}]
  %s3 = sld [smem:[#allocation0]]
  $region116: #{_lct_pipeline.3} parent=0
    _
  %s5 = ssub.s32 1, %s3
  %s6 = scalar_select 0, %s5, %s3
  $region1: #{_lct_pipeline.3} parent=0
    #allocation2 [shape = 'u8[8192]{0}', space=vmem, size = 0x2000, scoped, tag = 'input window, operand 1']
    #allocation3 [shape = 'u8[16384]{0}', space=vmem, size = 0x4000, scoped, tag = 'output window, operand 0']
    loop: start=0, step=1, limit=10
    $region2: #{_lct_pipeline.3} parent=1 // loop_pre_header
      _
    $region3: #{_lct_pipeline.3} parent=1 // loop_header
      %s8 = sphi 0, %s12
      %p9 = scmp.ge.s32.totalorder %s8, 10
      %s15 = sphi 0, %s27
      %s16 = sphi 0, %s23
      %s17 = sphi 0, %s15
      %s18 = sphi 0, %s16
      %s19 = sphi 0, %s17
      %s20 = sphi 0, %s18
      %s28 = sphi 0, %s28
      %s30 = sphi 0, %s28
      %s31 = sphi 0, %s30
      %s45 = sphi 0, %s31
      %s53 = sphi 0, %s55
      %s56 = sphi 0, %s53
      %s57 = sphi 0, %s56
      %s73 = sphi 0, %s57
      %s81 = sphi 0, %s83
      %s84 = sphi 0, %s81
      %s85 = sphi 0, %s84
      %s101 = sphi 0, %s85
    $region4: #{_lct_pipeline.3} parent=1 // loop_header_branch
      %11 = sbr.rel (%p9) target = $region8
    $region5: #{_lct_pipeline.3} parent=1 // loop_body
      %s13 = ssub.s32 %s8, 1
      %s14 = ssub.s32 %s8, 2
      %s21 = sadd.s32 1, %s16
      %p22 = scmp.ge.s32.totalorder %s21, 2
      %s23 = scalar_select %p22, 0, %s21
      %s24 = sadd.s32 1, %s15
      %s25 = scalar_select %p22, %s24, %s15
      %p26 = scmp.ge.s32.totalorder %s25, 4
      %s27 = scalar_select %p26, 0, %s25
      %s29 = sadd.s32 %s28, 1
      %p32 = scmp.eq.s32.totalorder %s8, 7
      %p33 = scmp.ne.s32.totalorder %s28, %s30
      %p34 = scmp.eq.s32.totalorder %s8, 0
      %p35 = por %p33, %p34
      %p36 = scmp.ne.s32.totalorder %s28, %s30
      %p37 = scmp.eq.s32.totalorder %s13, 7
      %p38 = por %p36, %p37
      %p39 = scmp.ne.s32.totalorder %s30, %s31
      %p40 = scmp.eq.s32.totalorder %s13, 0
      %p41 = por %p39, %p40
      %p42 = scmp.ne.s32.totalorder %s30, %s31
      %p43 = scmp.eq.s32.totalorder %s14, 7
      %p44 = por %p42, %p43
      %p46 = scmp.ne.s32.totalorder %s31, %s45
      %p47 = scmp.eq.s32.totalorder %s14, 0
      %p48 = por %p46, %p47
      %s49 = ssub.s32 %s15, %s27
      %s50 = ssub.s32 %s16, %s23
      %s51 = sor.u32 %s49, %s50
      %p52 = scmp.eq.s32.totalorder %s51, 0
      %s54 = sadd.s32 %s53, 1
      %s55 = scalar_select %p52, %s53, %s54
      %p58 = pneg %p52
      %p59 = scmp.eq.s32.totalorder %s8, 7
      %p60 = por %p58, %p59
      %p61 = scmp.ne.s32.totalorder %s53, %s56
      %p62 = scmp.eq.s32.totalorder %s8, 0
      %p63 = por %p61, %p62
      %p64 = scmp.ne.s32.totalorder %s53, %s56
      %p65 = scmp.eq.s32.totalorder %s13, 7
      %p66 = por %p64, %p65
      %p67 = scmp.ne.s32.totalorder %s56, %s57
      %p68 = scmp.eq.s32.totalorder %s13, 0
      %p69 = por %p67, %p68
      %p70 = scmp.ne.s32.totalorder %s56, %s57
      %p71 = scmp.eq.s32.totalorder %s14, 7
      %p72 = por %p70, %p71
      %p74 = scmp.ne.s32.totalorder %s57, %s73
      %p75 = scmp.eq.s32.totalorder %s14, 0
      %p76 = por %p74, %p75
      %s77 = ssub.s32 %s15, %s27
      %s78 = ssub.s32 %s16, %s23
      %s79 = sor.u32 %s77, %s78
      %p80 = scmp.eq.s32.totalorder %s79, 0
      %s82 = sadd.s32 %s81, 1
      %s83 = scalar_select %p80, %s81, %s82
      %p86 = pneg %p80
      %p87 = scmp.eq.s32.totalorder %s8, 7
      %p88 = por %p86, %p87
      %p89 = scmp.ne.s32.totalorder %s81, %s84
      %p90 = scmp.eq.s32.totalorder %s8, 0
      %p91 = por %p89, %p90
      %p92 = scmp.ne.s32.totalorder %s81, %s84
      %p93 = scmp.eq.s32.totalorder %s13, 7
      %p94 = por %p92, %p93
      %p95 = scmp.ne.s32.totalorder %s84, %s85
      %p96 = scmp.eq.s32.totalorder %s13, 0
      %p97 = por %p95, %p96
      %p98 = scmp.ne.s32.totalorder %s84, %s85
      %p99 = scmp.eq.s32.totalorder %s14, 7
      %p100 = por %p98, %p99
      %p102 = scmp.ne.s32.totalorder %s85, %s101
      %p103 = scmp.eq.s32.totalorder %s14, 0
      %p104 = por %p102, %p103
      %p105 = scmp.le.s32.totalorder 1, %s8
      %p106 = scmp.lt.s32.totalorder %s8, 9
      %p107 = pnand %p105, %p106
      %p108 = pneg %p107
      // Predicated region
      $region9: #{_lct_pipeline.3} parent=5 // pred_check
        _
      $region10: #{_lct_pipeline.3} parent=5 // pred_check_branch
        %110 = sbr.rel (%p107) target = $region12
      $region11: #{_lct_pipeline.3} parent=5 // pred_region
        %s111 = ssub.s32 %s8, 1
        // Predicated region
        $region13: #{_lct_pipeline.3} parent=11 // pred_check
          %p112 = pneg %p41
        $region14: #{_lct_pipeline.3} parent=11 // pred_check_branch
          %114 = sbr.rel (%p112) target = $region16
        $region15: #{_lct_pipeline.3} parent=11 // pred_region
          _
        $region16: #{_lct_pipeline.3} parent=11 // pred_fallthru
          _
      $region12: #{_lct_pipeline.3} parent=5 // pred_fallthru
        _
      %p115 = scmp.lt.s32.totalorder %s8, 8
      // Predicated region
      $region17: #{_lct_pipeline.3} parent=5 // pred_check
        %p116 = pneg %p115
      $region18: #{_lct_pipeline.3} parent=5 // pred_check_branch
        %118 = sbr.rel (%p116) target = $region20
      $region19: #{_lct_pipeline.3} parent=5 // pred_region
        // Predicated region
        $region21: #{_lct_pipeline.3} parent=19 // pred_check
          %p119 = pneg %p63
        $region22: #{_lct_pipeline.3} parent=19 // pred_check_branch
          %121 = sbr.rel (%p119) target = $region24
        $region23: #{_lct_pipeline.3} parent=19 // pred_region
          %s122 = sand.u32 %s53, 1
          %s123 = sand.u32 %s53, 1
          %s124 = smul.addr %s123, 8
          %s125 = scalar_lea.vmem [#allocation2], %s124
          %s126 = smul.addr %s15, 4
          %s127 = sadd.s32 %s16, %s126
          %s128 = smul.addr %s127, 4
          %s129 = scalar_lea.vmem %s1, %s128
          // Predicated region
          $region25: #{_lct_pipeline.3} parent=23 // pred_check
            _
          $region26: #{_lct_pipeline.3} parent=23 // pred_check_branch
            %131 = sbr.rel (0) target = $region28
          $region27: #{_lct_pipeline.3} parent=23 // pred_region
            // Predicated region
            $region29: #{_lct_pipeline.3} parent=27 // pred_check
              _
            $region30: #{_lct_pipeline.3} parent=27 // pred_check_branch
              %133 = sbr.rel target = $region32
            $region31: #{_lct_pipeline.3} parent=27 // pred_region
              // Predicated region
              $region44: #{_lct_pipeline.3} parent=31 // pred_check
                _
              $region45: #{_lct_pipeline.3} parent=31 // pred_check_branch
                %151 = sbr.rel (0) target = $region47
              $region46: #{_lct_pipeline.3} parent=31 // pred_region
                loop: start=0, step=1, limit=1
                $region48: #{_lct_pipeline.3} parent=46 // loop_pre_header
                  _
                $region49: #{_lct_pipeline.3} parent=46 // loop_header
                  %s153 = sphi 0, %s157
                  %p154 = scmp.ge.s32.totalorder %s153, 1
                  %s158 = sphi %s129, %s129
                  %s159 = sphi %s125, %s125
                $region50: #{_lct_pipeline.3} parent=46 // loop_header_branch
                  %156 = sbr.rel (%p154) target = $region54
                $region51: #{_lct_pipeline.3} parent=46 // loop_body
                  _
                $region52: #{_lct_pipeline.3} parent=46 // loop_footer
                  %s157 = sadd.s32 1, %s153
                $region53: #{_lct_pipeline.3} parent=46 // loop_footer_branch
                  %152 = sbr.rel target = $region49
                $region54: #{_lct_pipeline.3} parent=46 // loop_exit
                  _
                %s161 = ssub.s32 16, 1
                loop: start=0, step=1, limit=1
                $region55: #{_lct_pipeline.3} parent=46 // loop_pre_header
                  _
                $region56: #{_lct_pipeline.3} parent=46 // loop_header
                  %s163 = sphi 0, %s167
                  %p164 = scmp.ge.s32.totalorder %s163, 1
                  %s168 = sphi %s129, %s129
                  %s169 = sphi %s125, %s125
                $region57: #{_lct_pipeline.3} parent=46 // loop_header_branch
                  %166 = sbr.rel (%p164) target = $region61
                $region58: #{_lct_pipeline.3} parent=46 // loop_body
                  %v170 = vld [vmem:[%s168] sm:%s161]
                  %171 = vst [vmem:[%s169] sm:%s161] %v170
                  %v172 = vld [vmem:[%s168 + $0x8] sm:%s161]
                  %173 = vst [vmem:[%s169 + $0x4] sm:%s161] %v172
                $region59: #{_lct_pipeline.3} parent=46 // loop_footer
                  %s167 = sadd.s32 1, %s163
                $region60: #{_lct_pipeline.3} parent=46 // loop_footer_branch
                  %162 = sbr.rel target = $region56
                $region61: #{_lct_pipeline.3} parent=46 // loop_exit
                  _
              $region47: #{_lct_pipeline.3} parent=31 // pred_fallthru
                _
            $region32: #{_lct_pipeline.3} parent=27 // pred_fallthru
              _
            // Predicated region
            $region33: #{_lct_pipeline.3} parent=27 // pred_check
              _
            $region34: #{_lct_pipeline.3} parent=27 // pred_check_branch
              %135 = sbr.rel (0) target = $region36
            $region35: #{_lct_pipeline.3} parent=27 // pred_region
              %s137 = ssub.s32 16, 1
              loop: start=0, step=1, limit=1
              $region37: #{_lct_pipeline.3} parent=35 // loop_pre_header
                _
              $region38: #{_lct_pipeline.3} parent=35 // loop_header
                %s139 = sphi 0, %s143
                %p140 = scmp.ge.s32.totalorder %s139, 1
                %s144 = sphi %s129, %s129
                %s145 = sphi %s125, %s125
              $region39: #{_lct_pipeline.3} parent=35 // loop_header_branch
                %142 = sbr.rel (%p140) target = $region43
              $region40: #{_lct_pipeline.3} parent=35 // loop_body
                %v146 = vld [vmem:[%s144] sm:%s137]
                %147 = vst [vmem:[%s145] sm:%s137] %v146
                %v148 = vld [vmem:[%s144 + $0x8] sm:%s137]
                %149 = vst [vmem:[%s145 + $0x4] sm:%s137] %v148
              $region41: #{_lct_pipeline.3} parent=35 // loop_footer
                %s143 = sadd.s32 1, %s139
              $region42: #{_lct_pipeline.3} parent=35 // loop_footer_branch
                %138 = sbr.rel target = $region38
              $region43: #{_lct_pipeline.3} parent=35 // loop_exit
                _
            $region36: #{_lct_pipeline.3} parent=27 // pred_fallthru
              _
          $region28: #{_lct_pipeline.3} parent=23 // pred_fallthru
            _
          %174 = vnop
        $region24: #{_lct_pipeline.3} parent=19 // pred_fallthru
          _
      $region20: #{_lct_pipeline.3} parent=5 // pred_fallthru
        _
      %p175 = scmp.le.s32.totalorder 1, %s8
      %p176 = scmp.lt.s32.totalorder %s8, 9
      %p177 = pnand %p175, %p176
      %p178 = pneg %p177
      // Predicated region
      $region62: #{_lct_pipeline.3} parent=5 // pred_check
        _
      $region63: #{_lct_pipeline.3} parent=5 // pred_check_branch
        %180 = sbr.rel (%p177) target = $region65
      $region64: #{_lct_pipeline.3} parent=5 // pred_region
        %s181 = ssub.s32 %s8, 1
        %s182 = sand.u32 %s56, 1
        %s183 = sand.u32 %s56, 1
        %s184 = smul.addr %s183, 8
        %s185 = scalar_lea.vmem [#allocation2], %s184
        // Predicated region
        $region66: #{_lct_pipeline.3} parent=64 // pred_check
          %p186 = pneg %p69
        $region67: #{_lct_pipeline.3} parent=64 // pred_check_branch
          %188 = sbr.rel (%p186) target = $region69
        $region68: #{_lct_pipeline.3} parent=64 // pred_region
          _
        $region69: #{_lct_pipeline.3} parent=64 // pred_fallthru
          _
        %p189 = pneg %p41
        %p190 = pneg %p38
        %s191 = sand.u32 %s56, 1
        %s192 = sand.u32 %s56, 1
        %s193 = smul.addr %s192, 8
        %s194 = scalar_lea.vmem [#allocation2], %s193
        %p195 = pneg %p69
        %p196 = pneg %p66
        %p197 = pneg %p97
        %p198 = pneg %p94
        %s199 = sand.u32 %s84, 1
        %s200 = sand.u32 %s84, 1
        %s201 = smul.addr %s200, 16
        %s202 = scalar_lea.vmem [#allocation3], %s201
        %v204 = vld [vmem:[%s0] sm:$0xf]
        %v205 = vld [vmem:[%s0 + $0x4] sm:$0xf]
        %v206 = vld [vmem:[%s185] sm:$0xf]
        %v207 = vld [vmem:[%s185 + $0x4] sm:$0xf]
        %v210 = vunpack.c.l.b16 %v204
        %v211 = vunpack.c.l.b16 %v205
        %v212 = vpack.c.b16 %v211, %v210
        %v215 = vunpack.c.l.b16 %v206
        %v216 = vunpack.c.l.b16 %v207
        %v217 = vpack.c.b16 %v216, %v215
        %vm219 = vcmask 130048
        %v221 = vsel %vm219, %v212, 0
        %223 = vmatprep.subr.bf16.mxu0 0
        %224 = vmatpush1.bf16.msra.mxu0 0
        %225 = vmatprep.subr.bf16.mxu0 0
        %226 = vmatpush1.bf16.msra.mxu0 0
        %227 = vmatprep.subr.bf16.mxu0 0
        %228 = vmatpush1.bf16.msra.mxu0 0
        %229 = vmatprep.subr.bf16.mxu0 0
        %230 = vmatpush1.bf16.msra.mxu0 0
        %231 = vmatprep.subr.bf16.mxu0 0
        %232 = vmatpush1.bf16.msra.mxu0 0
        %233 = vmatprep.subr.bf16.mxu0 0
        %234 = vmatpush1.bf16.msra.mxu0 0
        %235 = vmatprep.subr.bf16.mxu0 0
        %236 = vmatpush1.bf16.msra.mxu0 0
        %237 = vmatprep.subr.bf16.mxu0 0
        %238 = vmatpush1.bf16.msra.mxu0 %v217
        %239 = vmatprep.subr.bf16.mxu0 0
        %240 = vmatpush2.bf16.msra.mxu0 0
        %241 = vmatprep.subr.bf16.mxu0 0
        %242 = vmatpush2.bf16.msra.mxu0 0
        %243 = vmatprep.subr.bf16.mxu0 0
        %244 = vmatpush2.bf16.msra.mxu0 0
        %245 = vmatprep.subr.bf16.mxu0 0
        %246 = vmatpush2.bf16.msra.mxu0 0
        %247 = vmatprep.subr.bf16.mxu0 0
        %248 = vmatpush2.bf16.msra.mxu0 0
        %249 = vmatprep.subr.bf16.mxu0 0
        %250 = vmatpush2.bf16.msra.mxu0 0
        %251 = vmatprep.subr.bf16.mxu0 0
        %252 = vmatpush2.bf16.msra.mxu0 0
        %253 = vmatprep.subr.bf16.mxu0 0
        %254 = vmatpush2.bf16.msra.mxu0 0
        %255 = vmatprep.mubr.bf16.mxu0 0
        %256 = vmatmul.mubr.bf16.gmra.mxu0 %v221
        %v257 = vpop.f32.mrf.mxu0
        %v258 = vadd.f32 0.0, %v257
        %v259 = vpop.f32.mrf.mxu0
        %v260 = vpop.f32.mrf.mxu0
        %v261 = vadd.f32 0.0, %v260
        %v262 = vpop.f32.mrf.mxu0
        %263 = vdwg.mxu0
        %v264 = vmax.f32 %v258, 0.0
        %v265 = vmax.f32 %v261, 0.0
        %266 = vst [vmem:[%s202] sm:$0xff] %v264
        %267 = vst [vmem:[%s202 + $0x8] sm:$0xff] %v265
        %s268 = sand.u32 %s84, 1
        %s269 = sand.u32 %s84, 1
        %s270 = smul.addr %s269, 16
        %s271 = scalar_lea.vmem [#allocation3], %s270
        // Predicated region
        $region70: #{_lct_pipeline.3} parent=64 // pred_check
          %p272 = pneg %p94
        $region71: #{_lct_pipeline.3} parent=64 // pred_check_branch
          %274 = sbr.rel (%p272) target = $region73
        $region72: #{_lct_pipeline.3} parent=64 // pred_region
          %s275 = smul.addr %s17, 4
          %s276 = sadd.s32 %s18, %s275
          %s277 = smul.addr %s276, 8
          %s278 = scalar_lea.vmem %s2, %s277
          // Predicated region
          $region74: #{_lct_pipeline.3} parent=72 // pred_check
            _
          $region75: #{_lct_pipeline.3} parent=72 // pred_check_branch
            %280 = sbr.rel (0) target = $region77
          $region76: #{_lct_pipeline.3} parent=72 // pred_region
            // Predicated region
            $region78: #{_lct_pipeline.3} parent=76 // pred_check
              _
            $region79: #{_lct_pipeline.3} parent=76 // pred_check_branch
              %282 = sbr.rel (0) target = $region81
            $region80: #{_lct_pipeline.3} parent=76 // pred_region
              // Predicated region
              $region93: #{_lct_pipeline.3} parent=80 // pred_check
                _
              $region94: #{_lct_pipeline.3} parent=80 // pred_check_branch
                %300 = sbr.rel (0) target = $region96
              $region95: #{_lct_pipeline.3} parent=80 // pred_region
                loop: start=0, step=1, limit=1
                $region97: #{_lct_pipeline.3} parent=95 // loop_pre_header
                  _
                $region98: #{_lct_pipeline.3} parent=95 // loop_header
                  %s302 = sphi 0, %s306
                  %p303 = scmp.ge.s32.totalorder %s302, 1
                  %s307 = sphi %s271, %s271
                  %s308 = sphi %s278, %s278
                $region99: #{_lct_pipeline.3} parent=95 // loop_header_branch
                  %305 = sbr.rel (%p303) target = $region103
                $region100: #{_lct_pipeline.3} parent=95 // loop_body
                  %v309 = vld [vmem:[%s307] sm:$0xff]
                  %310 = vst [vmem:[%s308] sm:$0xff] %v309
                  %v311 = vld [vmem:[%s307 + $0x8] sm:$0xff]
                  %312 = vst [vmem:[%s308 + $0x10] sm:$0xff] %v311
                $region101: #{_lct_pipeline.3} parent=95 // loop_footer
                  %s306 = sadd.s32 1, %s302
                $region102: #{_lct_pipeline.3} parent=95 // loop_footer_branch
                  %301 = sbr.rel target = $region98
                $region103: #{_lct_pipeline.3} parent=95 // loop_exit
                  _
              $region96: #{_lct_pipeline.3} parent=80 // pred_fallthru
                _
              // Predicated region
              $region104: #{_lct_pipeline.3} parent=80 // pred_check
                _
              $region105: #{_lct_pipeline.3} parent=80 // pred_check_branch
                %314 = sbr.rel target = $region107
              $region106: #{_lct_pipeline.3} parent=80 // pred_region
                _
              $region107: #{_lct_pipeline.3} parent=80 // pred_fallthru
                _
            $region81: #{_lct_pipeline.3} parent=76 // pred_fallthru
              _
            // Predicated region
            $region82: #{_lct_pipeline.3} parent=76 // pred_check
              _
            $region83: #{_lct_pipeline.3} parent=76 // pred_check_branch
              %284 = sbr.rel target = $region85
            $region84: #{_lct_pipeline.3} parent=76 // pred_region
              %s286 = ssub.s32 256, 1
              loop: start=0, step=1, limit=1
              $region86: #{_lct_pipeline.3} parent=84 // loop_pre_header
                _
              $region87: #{_lct_pipeline.3} parent=84 // loop_header
                %s288 = sphi 0, %s292
                %p289 = scmp.ge.s32.totalorder %s288, 1
                %s293 = sphi %s271, %s271
                %s294 = sphi %s278, %s278
              $region88: #{_lct_pipeline.3} parent=84 // loop_header_branch
                %291 = sbr.rel (%p289) target = $region92
              $region89: #{_lct_pipeline.3} parent=84 // loop_body
                %v295 = vld [vmem:[%s293] sm:%s286]
                %296 = vst [vmem:[%s294] sm:%s286] %v295
                %v297 = vld [vmem:[%s293 + $0x8] sm:%s286]
                %298 = vst [vmem:[%s294 + $0x10] sm:%s286] %v297
              $region90: #{_lct_pipeline.3} parent=84 // loop_footer
                %s292 = sadd.s32 1, %s288
              $region91: #{_lct_pipeline.3} parent=84 // loop_footer_branch
                %287 = sbr.rel target = $region87
              $region92: #{_lct_pipeline.3} parent=84 // loop_exit
                _
            $region85: #{_lct_pipeline.3} parent=76 // pred_fallthru
              _
          $region77: #{_lct_pipeline.3} parent=72 // pred_fallthru
            _
          %315 = vnop
        $region73: #{_lct_pipeline.3} parent=64 // pred_fallthru
          _
      $region65: #{_lct_pipeline.3} parent=5 // pred_fallthru
        _
      %p316 = scmp.le.s32.totalorder 2, %s8
      // Predicated region
      $region108: #{_lct_pipeline.3} parent=5 // pred_check
        %p317 = pneg %p316
      $region109: #{_lct_pipeline.3} parent=5 // pred_check_branch
        %319 = sbr.rel (%p317) target = $region111
      $region110: #{_lct_pipeline.3} parent=5 // pred_region
        %s320 = ssub.s32 %s8, 2
        // Predicated region
        $region112: #{_lct_pipeline.3} parent=110 // pred_check
          %p321 = pneg %p100
        $region113: #{_lct_pipeline.3} parent=110 // pred_check_branch
          %323 = sbr.rel (%p321) target = $region115
        $region114: #{_lct_pipeline.3} parent=110 // pred_region
          %s324 = sand.u32 %s85, 1
          %s325 = sand.u32 %s85, 1
          %s326 = smul.addr %s325, 16
          %s327 = scalar_lea.vmem [#allocation3], %s326
        $region115: #{_lct_pipeline.3} parent=110 // pred_fallthru
          _
      $region111: #{_lct_pipeline.3} parent=5 // pred_fallthru
        _
    $region6: #{_lct_pipeline.3} parent=1 // loop_footer
      %s12 = sadd.s32 1, %s8
    $region7: #{_lct_pipeline.3} parent=1 // loop_footer_branch
      %7 = sbr.rel target = $region3
    $region8: #{_lct_pipeline.3} parent=1 // loop_exit
      _

</llo_original>
